<compile_context>
chip_gen: v7x
topology: tpu7x:2x2x1
jax: 0.10.0
libtpu: 0.0.40
codegen_flags: <defaults>
</compile_context>

<pallas_src>
import functools

import jax
import jax.numpy as jnp
from jax.experimental import pallas as pl
from jax.experimental.pallas import tpu as pltpu

LANE = 128       # lane width / channel padding target
NODE_ALIGN = 128 # node-dim padding granularity (= smallest row tile)


def _round_up(n, m):
    return (n + m - 1) // m * m


def _pad2d(x, rows, cols):
    r, c = x.shape
    return jnp.pad(x, ((0, rows - r), (0, cols - c)))


def _pick_tiles(n_p):
    """Row tile TM (want >=2 row tiles for megacore) and reduction tile TK."""
    tm = 128
    for cand in (512, 256, 128):
        if 2 * cand <= n_p and n_p % cand == 0:
            tm = cand
            break
    tk = 128
    for cand in (1024, 512, 256, 128):
        if cand <= n_p and n_p % cand == 0:
            tk = cand
            break
    return min(tm, n_p), min(tk, n_p)


# ----------------------------------------------------------------------------
# Kernel 1: per-row-tile feature transform  o = x @ w   (channels fully resident)
# ----------------------------------------------------------------------------
def linear_kernel(x_ref, w_ref, o_ref):
    o_ref[...] = jnp.dot(
        x_ref[...], w_ref[...], preferred_element_type=jnp.float32
    ).astype(o_ref.dtype)


def linear(x, w, *, tm, out_dtype=jnp.bfloat16):
    n, c_in = x.shape
    c_out = w.shape[1]
    return pl.pallas_call(
        linear_kernel,
        out_shape=jax.ShapeDtypeStruct((n, c_out), out_dtype),
        grid_spec=pltpu.PrefetchScalarGridSpec(
            num_scalar_prefetch=0,
            grid=(n // tm,),
            in_specs=[
                pl.BlockSpec((tm, c_in), lambda i: (i, 0)),     # true c_in (no lane padding)
                pl.BlockSpec((c_in, c_out), lambda i: (0, 0)),  # resident weight
            ],
            out_specs=pl.BlockSpec((tm, c_out), lambda i: (i, 0)),
        ),
        compiler_params=pltpu.CompilerParams(dimension_semantics=("parallel",)),
    )(x, w)


# ----------------------------------------------------------------------------
# Kernel 2: tiled aggregation with fused epilogue
#   acc = sum_k A[i,k] @ Y[k]          (f32 VMEM accumulator, reduction axis last)
#   epilogue:  r = acc + b ; r = relu(r) (optional) ; r = r @ W2 (optional) ; write
# ----------------------------------------------------------------------------
def agg_kernel(a_ref, y_ref, b_ref, *rest, apply_relu, fuse_w2):
    if fuse_w2:
        w2_ref, o_ref, acc_ref = rest
    else:
        o_ref, acc_ref = rest

    k = pl.program_id(1)
    prod = jnp.dot(a_ref[...], y_ref[...], preferred_element_type=jnp.float32)

    @pl.when(k == 0)
    def _():
        acc_ref[...] = prod          # direct write: no zero-init store + add

    @pl.when(k != 0)
    def _():
        acc_ref[...] += prod

    @pl.when(k == pl.num_programs(1) - 1)
    def _():
        r = acc_ref[...] + b_ref[...]
        if apply_relu:
            r = jnp.maximum(r, 0.0)
        if fuse_w2:
            r = jnp.dot(r.astype(w2_ref.dtype), w2_ref[...],
                        preferred_element_type=jnp.float32)
        o_ref[...] = r.astype(o_ref.dtype)


def aggregate(a, y, b, w2=None, *, apply_relu, out_dtype, tm, tk):
    n = a.shape[0]
    f = y.shape[1]
    f_out = w2.shape[1] if w2 is not None else f
    fuse_w2 = w2 is not None

    in_specs = [
        pl.BlockSpec((tm, tk), lambda i, k: (i, k)),   # A tile (bf16)
        pl.BlockSpec((tk, f), lambda i, k: (k, 0)),    # features tile (bf16)
        pl.BlockSpec((1, f), lambda i, k: (0, 0)),     # resident bias (f32)
    ]
    args = [a, y, b]
    if fuse_w2:
        in_specs.append(pl.BlockSpec((f, f_out), lambda i, k: (0, 0)))  # resident W2
        args.append(w2)

    kern = functools.partial(agg_kernel, apply_relu=apply_relu, fuse_w2=fuse_w2)

    flops = 2 * n * n * f + (2 * n * f * f_out if fuse_w2 else 0)
    bytes_accessed = (
        n * n * a.dtype.itemsize                          # A read once
        + (n // tm) * n * f * y.dtype.itemsize            # Y re-read per row tile
        + n * f_out * jnp.dtype(out_dtype).itemsize       # output write
    )

    return pl.pallas_call(
        kern,
        out_shape=jax.ShapeDtypeStruct((n, f_out), out_dtype),
        grid_spec=pltpu.PrefetchScalarGridSpec(
            num_scalar_prefetch=0,
            grid=(n // tm, n // tk),
            in_specs=in_specs,
            out_specs=pl.BlockSpec((tm, f_out), lambda i, k: (i, 0)),
            scratch_shapes=[pltpu.VMEM((tm, f), jnp.float32)],
        ),
        compiler_params=pltpu.CompilerParams(
            dimension_semantics=("parallel", "arbitrary"),
            vmem_limit_bytes=32 * 1024 * 1024,
        ),
        cost_estimate=pl.CostEstimate(
            flops=flops, transcendentals=0, bytes_accessed=bytes_accessed
        ),
    )(*args)


# ----------------------------------------------------------------------------
# Full 2-layer GCN forward:
#   out = A @ ( relu(A @ (X@W1) + b1) @ W2 ) + b2
# a_p must already be (n_p, n_p) bf16, padded & normalized (built once, outside jit).
# ----------------------------------------------------------------------------
@jax.jit
def gcn_forward(a_p, x, w1, b1, w2, b2):
    n_p = a_p.shape[0]
    n, c_in = x.shape
    hidden = w1.shape[1]
    c_out = w2.shape[1]

    hid_p = _round_up(hidden, LANE)
    c_out_p = _round_up(c_out, LANE)
    tm, tk = _pick_tiles(n_p)

    # pad node rows only (zero rows/cols contribute exact zeros; sliced off at the end)
    x_p = jnp.pad(x, ((0, n_p - n), (0, 0))).astype(jnp.bfloat16)        # (n_p, c_in)
    w1_p = _pad2d(w1, c_in, hid_p).astype(jnp.bfloat16)                  # (c_in, hid_p)
    w2_p = _pad2d(w2, hidden, c_out_p).astype(jnp.bfloat16)              # (hidden, ...) rows
    w2_p = _pad2d(w2_p, hid_p, c_out_p)                                  # (hid_p, c_out_p)
    b1_p = _pad2d(b1.reshape(1, -1).astype(jnp.float32), 1, hid_p)
    b2_p = _pad2d(b2.reshape(1, -1).astype(jnp.float32), 1, c_out_p)

    # layer 1 feature transform: XW1 (n_p, hid_p) bf16
    xw1 = linear(x_p, w1_p, tm=tm)

    # layer 1 aggregation + bias + ReLU, with layer 2's linear (H @ W2) fused into the
    # epilogue -> H2 = relu(A @ XW1 + b1) @ W2   (dropout = identity, eval mode)
    h2 = aggregate(a_p, xw1, b1_p, w2_p,
                   apply_relu=True, out_dtype=jnp.bfloat16, tm=tm, tk=tk)

    # layer 2 aggregation + bias
    out = aggregate(a_p, h2, b2_p, None,
                    apply_relu=False, out_dtype=jnp.float32, tm=tm, tk=tk)

    return out[:n, :c_out]


# ----------------------------------------------------------------------------
# Plain-JAX glue: GCN-normalized dense adjacency (self-loops + sym. normalization).
# Matches PyG semantics: deg over col, norm = d^-1/2[row]*d^-1/2[col], sum-aggregation.
# Built directly at padded size & target dtype so the forward pass never re-pads/casts.
# ----------------------------------------------------------------------------
def build_norm_adj(edge_index, num_nodes, padded_nodes=None, dtype=jnp.float32):
    if padded_nodes is None:
        padded_nodes = num_nodes
    src, dst = edge_index[0], edge_index[1]
    loops = jnp.arange(num_nodes, dtype=edge_index.dtype)
    src = jnp.concatenate([src, loops])
    dst = jnp.concatenate([dst, loops])

    deg = jnp.zeros((num_nodes,), jnp.float32).at[dst].add(1.0)
    deg_inv_sqrt = jnp.where(deg > 0, jax.lax.rsqrt(jnp.maximum(deg, 1e-30)), 0.0)
    norm = deg_inv_sqrt[src] * deg_inv_sqrt[dst]

    a_hat = jnp.zeros((padded_nodes, padded_nodes), jnp.float32).at[dst, src].add(norm)
    return a_hat.astype(dtype)


def glorot(key, shape):
    fan_in, fan_out = shape
    limit = jnp.sqrt(6.0 / (fan_in + fan_out))
    return jax.random.uniform(key, shape, jnp.float32, -limit, limit)


if __name__ == "__main__":
    # small synthetic problem (2x2 row/reduction tiles after padding to 256 nodes)
    N = 200        # nodes
    C_IN = 16      # in_channels
    HIDDEN = 16    # hidden_dims=[16]
    C_OUT = 8      # out_channels
    E = 400        # directed edges (before self-loops)

    key = jax.random.PRNGKey(0)
    k_x, k_src, k_dst, k_w1, k_w2 = jax.random.split(key, 5)

    x = jax.random.normal(k_x, (N, C_IN), jnp.float32)
    edge_index = jnp.stack(
        [
            jax.random.randint(k_src, (E,), 0, N, jnp.int32),
            jax.random.randint(k_dst, (E,), 0, N, jnp.int32),
        ],
        axis=0,
    )  # (2, E)

    # parameters: glorot weights, zero biases (matches GCNConv.reset_parameters)
    w1 = glorot(k_w1, (C_IN, HIDDEN))
    b1 = jnp.zeros((HIDDEN,), jnp.float32)
    w2 = glorot(k_w2, (HIDDEN, C_OUT))
    b2 = jnp.zeros((C_OUT,), jnp.float32)

    # normalized adjacency: built once, already padded + bf16 (hoisted out of the forward)
    N_P = _round_up(N, NODE_ALIGN)
    a_p = build_norm_adj(edge_index, N, padded_nodes=N_P, dtype=jnp.bfloat16)

    out = gcn_forward(a_p, x, w1, b1, w2, b2)
    jax.block_until_ready(out)

    # pure-f32 JAX reference of the same math (kernel runs bf16 inputs / f32 accumulation)
    a_ref = build_norm_adj(edge_index, N, dtype=jnp.float32)
    ref_h = jnp.maximum(a_ref @ (x @ w1) + b1[None, :], 0.0)
    ref = a_ref @ (ref_h @ w2) + b2[None, :]

    assert out.shape == (N, C_OUT)
    err = float(jnp.max(jnp.abs(out - ref)))
    scale = float(jnp.max(jnp.abs(ref))) + 1e-6
    assert err / scale < 5e-2, f"relative error too large: {err / scale}"

    print("KERNEL_OK")
</pallas_src>

<mosaic_0001>
module attributes {stable_mosaic.version = 11 : i64} {
  func.func @agg_kernel(%arg0: i32, %arg1: i32, %arg2: memref<128x256xbf16, #tpu.memory_space<vmem>>, %arg3: memref<256x128xbf16, #tpu.memory_space<vmem>>, %arg4: memref<1x128xf32, #tpu.memory_space<vmem>>, %arg5: memref<128x128xbf16, #tpu.memory_space<vmem>>, %arg6: memref<128x128xbf16, #tpu.memory_space<vmem>>, %arg7: memref<128x128xf32, #tpu.memory_space<vmem>>) attributes {dimension_semantics = [#tpu.dimension_semantics<parallel>, #tpu.dimension_semantics<arbitrary>], iteration_bounds = array<i64: 2, 1>, scalar_prefetch = 0 : i64, scratch_operands = 1 : i64, tpu.core_type = #tpu.core_type<tc>, window_params = [{transform_indices = @transform_0, window_bounds = array<i64: 128, 256>}, {transform_indices = @transform_1, window_bounds = array<i64: 256, 128>}, {pipeline_mode = #tpu.pipeline_mode<synchronous>, transform_indices = @transform_2, window_bounds = array<i64: 1, 128>}, {pipeline_mode = #tpu.pipeline_mode<synchronous>, transform_indices = @transform_3, window_bounds = array<i64: 128, 128>}, {transform_indices = @transform_4, window_bounds = array<i64: 128, 128>}]} {
    %c0 = arith.constant 0 : index
    %c0_0 = arith.constant 0 : index
    %0 = vector.load %arg2[%c0, %c0_0] : memref<128x256xbf16, #tpu.memory_space<vmem>>, vector<128x256xbf16>
    %c0_1 = arith.constant 0 : index
    %c0_2 = arith.constant 0 : index
    %1 = vector.load %arg3[%c0_1, %c0_2] : memref<256x128xbf16, #tpu.memory_space<vmem>>, vector<256x128xbf16>
    %cst = arith.constant dense<0.000000e+00> : vector<128x128xf32>
    %2 = tpu.matmul %0, %1, %cst {dimension_numbers = #tpu.dot_dimension_numbers<[1], [0], [0], [1], [0, 0, 1, 1], [], []>} : vector<128x256xbf16>, vector<256x128xbf16>, vector<128x128xf32> -> vector<128x128xf32>
    %c0_i32 = arith.constant 0 : i32
    %3 = arith.cmpi eq, %arg1, %c0_i32 : i32
    %4 = arith.extui %3 : i1 to i32
    %c0_i32_3 = arith.constant 0 : i32
    %5 = arith.cmpi ne, %4, %c0_i32_3 : i32
    scf.if %5 {
      %c0_8 = arith.constant 0 : index
      %c0_9 = arith.constant 0 : index
      %12 = vector.load %arg7[%c0_8, %c0_9] : memref<128x128xf32, #tpu.memory_space<vmem>>, vector<128x128xf32>
      tpu.vector_store %arg7[%c0_8, %c0_9], %2 {strides = array<i32>} : memref<128x128xf32, #tpu.memory_space<vmem>>, vector<128x128xf32>,
    } else {
    }
    %c0_i32_4 = arith.constant 0 : i32
    %6 = arith.cmpi ne, %arg1, %c0_i32_4 : i32
    %7 = arith.extui %6 : i1 to i32
    %c0_i32_5 = arith.constant 0 : i32
    %8 = arith.cmpi ne, %7, %c0_i32_5 : i32
    scf.if %8 {
      %c0_8 = arith.constant 0 : index
      %c0_9 = arith.constant 0 : index
      %12 = vector.load %arg7[%c0_8, %c0_9] : memref<128x128xf32, #tpu.memory_space<vmem>>, vector<128x128xf32>
      %13 = arith.addf %12, %2 : vector<128x128xf32>
      %c0_10 = arith.constant 0 : index
      %c0_11 = arith.constant 0 : index
      %14 = vector.load %arg7[%c0_10, %c0_11] : memref<128x128xf32, #tpu.memory_space<vmem>>, vector<128x128xf32>
      tpu.vector_store %arg7[%c0_10, %c0_11], %13 {strides = array<i32>} : memref<128x128xf32, #tpu.memory_space<vmem>>, vector<128x128xf32>,
    } else {
    }
    %c0_i32_6 = arith.constant 0 : i32
    %9 = arith.cmpi eq, %arg1, %c0_i32_6 : i32
    %10 = arith.extui %9 : i1 to i32
    %c0_i32_7 = arith.constant 0 : i32
    %11 = arith.cmpi ne, %10, %c0_i32_7 : i32
    scf.if %11 {
      %c0_8 = arith.constant 0 : index
      %c0_9 = arith.constant 0 : index
      %12 = vector.load %arg7[%c0_8, %c0_9] : memref<128x128xf32, #tpu.memory_space<vmem>>, vector<128x128xf32>
      %c0_10 = arith.constant 0 : index
      %c0_11 = arith.constant 0 : index
      %13 = vector.load %arg4[%c0_10, %c0_11] : memref<1x128xf32, #tpu.memory_space<vmem>>, vector<1x128xf32>
      %14 = vector.broadcast %13 : vector<1x128xf32> to vector<128x128xf32>
      %15 = arith.addf %12, %14 : vector<128x128xf32>
      %cst_12 = arith.constant 0.000000e+00 : f32
      %16 = vector.broadcast %cst_12 : f32 to vector<128x128xf32>
      %17 = arith.maximumf %15, %16 : vector<128x128xf32>
      %18 = arith.truncf %17 : vector<128x128xf32> to vector<128x128xbf16>
      %c0_13 = arith.constant 0 : index
      %c0_14 = arith.constant 0 : index
      %19 = vector.load %arg5[%c0_13, %c0_14] : memref<128x128xbf16, #tpu.memory_space<vmem>>, vector<128x128xbf16>
      %cst_15 = arith.constant dense<0.000000e+00> : vector<128x128xf32>
      %20 = tpu.matmul %18, %19, %cst_15 {dimension_numbers = #tpu.dot_dimension_numbers<[1], [0], [0], [1], [0, 0, 1, 1], [], []>} : vector<128x128xbf16>, vector<128x128xbf16>, vector<128x128xf32> -> vector<128x128xf32>
      %21 = arith.truncf %20 : vector<128x128xf32> to vector<128x128xbf16>
      %c0_16 = arith.constant 0 : index
      %c0_17 = arith.constant 0 : index
      %22 = vector.load %arg6[%c0_16, %c0_17] : memref<128x128xbf16, #tpu.memory_space<vmem>>, vector<128x128xbf16>
      tpu.vector_store %arg6[%c0_16, %c0_17], %21 {strides = array<i32>} : memref<128x128xbf16, #tpu.memory_space<vmem>>, vector<128x128xbf16>,
    } else {
    }
    return
  }
  func.func @transform_0(%arg0: i32, %arg1: i32) -> (i32, i32) {
    %c0_i32 = arith.constant 0 : i32
    return %arg0, %arg1 : i32, i32
  }
  func.func @transform_1(%arg0: i32, %arg1: i32) -> (i32, i32) {
    %c0_i32 = arith.constant 0 : i32
    %c0_i32_0 = arith.constant 0 : i32
    return %arg1, %c0_i32 : i32, i32
  }
  func.func @transform_2(%arg0: i32, %arg1: i32) -> (i32, i32) {
    %c0_i32 = arith.constant 0 : i32
    %c0_i32_0 = arith.constant 0 : i32
    %c0_i32_1 = arith.constant 0 : i32
    return %c0_i32, %c0_i32_0 : i32, i32
  }
  func.func @transform_3(%arg0: i32, %arg1: i32) -> (i32, i32) {
    %c0_i32 = arith.constant 0 : i32
    %c0_i32_0 = arith.constant 0 : i32
    %c0_i32_1 = arith.constant 0 : i32
    return %c0_i32, %c0_i32_0 : i32, i32
  }
  func.func @transform_4(%arg0: i32, %arg1: i32) -> (i32, i32) {
    %c0_i32 = arith.constant 0 : i32
    %c0_i32_0 = arith.constant 0 : i32
    return %arg0, %c0_i32 : i32, i32
  }
}

module attributes {stable_mosaic.version = 11 : i64} {
  func.func @linear_kernel(%arg0: i32, %arg1: memref<128x16xbf16, #tpu.memory_space<vmem>>, %arg2: memref<16x128xbf16, #tpu.memory_space<vmem>>, %arg3: memref<128x128xbf16, #tpu.memory_space<vmem>>) attributes {dimension_semantics = [#tpu.dimension_semantics<parallel>], iteration_bounds = array<i64: 2>, scalar_prefetch = 0 : i64, scratch_operands = 0 : i64, tpu.core_type = #tpu.core_type<tc>, window_params = [{transform_indices = @transform_0, window_bounds = array<i64: 128, 16>}, {pipeline_mode = #tpu.pipeline_mode<synchronous>, transform_indices = @transform_1, window_bounds = array<i64: 16, 128>}, {transform_indices = @transform_2, window_bounds = array<i64: 128, 128>}]} {
    %c0 = arith.constant 0 : index
    %c0_0 = arith.constant 0 : index
    %0 = vector.load %arg1[%c0, %c0_0] : memref<128x16xbf16, #tpu.memory_space<vmem>>, vector<128x16xbf16>
    %c0_1 = arith.constant 0 : index
    %c0_2 = arith.constant 0 : index
    %1 = vector.load %arg2[%c0_1, %c0_2] : memref<16x128xbf16, #tpu.memory_space<vmem>>, vector<16x128xbf16>
    %cst = arith.constant dense<0.000000e+00> : vector<128x128xf32>
    %2 = tpu.matmul %0, %1, %cst {dimension_numbers = #tpu.dot_dimension_numbers<[1], [0], [0], [1], [0, 0, 1, 1], [], []>} : vector<128x16xbf16>, vector<16x128xbf16>, vector<128x128xf32> -> vector<128x128xf32>
    %3 = arith.truncf %2 : vector<128x128xf32> to vector<128x128xbf16>
    %c0_3 = arith.constant 0 : index
    %c0_4 = arith.constant 0 : index
    %4 = vector.load %arg3[%c0_3, %c0_4] : memref<128x128xbf16, #tpu.memory_space<vmem>>, vector<128x128xbf16>
    tpu.vector_store %arg3[%c0_3, %c0_4], %3 {strides = array<i32>} : memref<128x128xbf16, #tpu.memory_space<vmem>>, vector<128x128xbf16>,
    return
  }
  func.func @transform_0(%arg0: i32) -> (i32, i32) {
    %c0_i32 = arith.constant 0 : i32
    %c0_i32_0 = arith.constant 0 : i32
    return %arg0, %c0_i32 : i32, i32
  }
  func.func @transform_1(%arg0: i32) -> (i32, i32) {
    %c0_i32 = arith.constant 0 : i32
    %c0_i32_0 = arith.constant 0 : i32
    %c0_i32_1 = arith.constant 0 : i32
    return %c0_i32, %c0_i32_0 : i32, i32
  }
  func.func @transform_2(%arg0: i32) -> (i32, i32) {
    %c0_i32 = arith.constant 0 : i32
    %c0_i32_0 = arith.constant 0 : i32
    return %arg0, %c0_i32 : i32, i32
  }
}

module attributes {stable_mosaic.version = 11 : i64} {
  func.func @agg_kernel(%arg0: i32, %arg1: i32, %arg2: memref<128x256xbf16, #tpu.memory_space<vmem>>, %arg3: memref<256x128xbf16, #tpu.memory_space<vmem>>, %arg4: memref<1x128xf32, #tpu.memory_space<vmem>>, %arg5: memref<128x128xf32, #tpu.memory_space<vmem>>, %arg6: memref<128x128xf32, #tpu.memory_space<vmem>>) attributes {dimension_semantics = [#tpu.dimension_semantics<parallel>, #tpu.dimension_semantics<arbitrary>], iteration_bounds = array<i64: 2, 1>, scalar_prefetch = 0 : i64, scratch_operands = 1 : i64, tpu.core_type = #tpu.core_type<tc>, window_params = [{transform_indices = @transform_0, window_bounds = array<i64: 128, 256>}, {transform_indices = @transform_1, window_bounds = array<i64: 256, 128>}, {pipeline_mode = #tpu.pipeline_mode<synchronous>, transform_indices = @transform_2, window_bounds = array<i64: 1, 128>}, {transform_indices = @transform_3, window_bounds = array<i64: 128, 128>}]} {
    %c0 = arith.constant 0 : index
    %c0_0 = arith.constant 0 : index
    %0 = vector.load %arg2[%c0, %c0_0] : memref<128x256xbf16, #tpu.memory_space<vmem>>, vector<128x256xbf16>
    %c0_1 = arith.constant 0 : index
    %c0_2 = arith.constant 0 : index
    %1 = vector.load %arg3[%c0_1, %c0_2] : memref<256x128xbf16, #tpu.memory_space<vmem>>, vector<256x128xbf16>
    %cst = arith.constant dense<0.000000e+00> : vector<128x128xf32>
    %2 = tpu.matmul %0, %1, %cst {dimension_numbers = #tpu.dot_dimension_numbers<[1], [0], [0], [1], [0, 0, 1, 1], [], []>} : vector<128x256xbf16>, vector<256x128xbf16>, vector<128x128xf32> -> vector<128x128xf32>
    %c0_i32 = arith.constant 0 : i32
    %3 = arith.cmpi eq, %arg1, %c0_i32 : i32
    %4 = arith.extui %3 : i1 to i32
    %c0_i32_3 = arith.constant 0 : i32
    %5 = arith.cmpi ne, %4, %c0_i32_3 : i32
    scf.if %5 {
      %c0_8 = arith.constant 0 : index
      %c0_9 = arith.constant 0 : index
      %12 = vector.load %arg6[%c0_8, %c0_9] : memref<128x128xf32, #tpu.memory_space<vmem>>, vector<128x128xf32>
      tpu.vector_store %arg6[%c0_8, %c0_9], %2 {strides = array<i32>} : memref<128x128xf32, #tpu.memory_space<vmem>>, vector<128x128xf32>,
    } else {
    }
    %c0_i32_4 = arith.constant 0 : i32
    %6 = arith.cmpi ne, %arg1, %c0_i32_4 : i32
    %7 = arith.extui %6 : i1 to i32
    %c0_i32_5 = arith.constant 0 : i32
    %8 = arith.cmpi ne, %7, %c0_i32_5 : i32
    scf.if %8 {
      %c0_8 = arith.constant 0 : index
      %c0_9 = arith.constant 0 : index
      %12 = vector.load %arg6[%c0_8, %c0_9] : memref<128x128xf32, #tpu.memory_space<vmem>>, vector<128x128xf32>
      %13 = arith.addf %12, %2 : vector<128x128xf32>
      %c0_10 = arith.constant 0 : index
      %c0_11 = arith.constant 0 : index
      %14 = vector.load %arg6[%c0_10, %c0_11] : memref<128x128xf32, #tpu.memory_space<vmem>>, vector<128x128xf32>
      tpu.vector_store %arg6[%c0_10, %c0_11], %13 {strides = array<i32>} : memref<128x128xf32, #tpu.memory_space<vmem>>, vector<128x128xf32>,
    } else {
    }
    %c0_i32_6 = arith.constant 0 : i32
    %9 = arith.cmpi eq, %arg1, %c0_i32_6 : i32
    %10 = arith.extui %9 : i1 to i32
    %c0_i32_7 = arith.constant 0 : i32
    %11 = arith.cmpi ne, %10, %c0_i32_7 : i32
    scf.if %11 {
      %c0_8 = arith.constant 0 : index
      %c0_9 = arith.constant 0 : index
      %12 = vector.load %arg6[%c0_8, %c0_9] : memref<128x128xf32, #tpu.memory_space<vmem>>, vector<128x128xf32>
      %c0_10 = arith.constant 0 : index
      %c0_11 = arith.constant 0 : index
      %13 = vector.load %arg4[%c0_10, %c0_11] : memref<1x128xf32, #tpu.memory_space<vmem>>, vector<1x128xf32>
      %14 = vector.broadcast %13 : vector<1x128xf32> to vector<128x128xf32>
      %15 = arith.addf %12, %14 : vector<128x128xf32>
      %c0_12 = arith.constant 0 : index
      %c0_13 = arith.constant 0 : index
      %16 = vector.load %arg5[%c0_12, %c0_13] : memref<128x128xf32, #tpu.memory_space<vmem>>, vector<128x128xf32>
      tpu.vector_store %arg5[%c0_12, %c0_13], %15 {strides = array<i32>} : memref<128x128xf32, #tpu.memory_space<vmem>>, vector<128x128xf32>,
    } else {
    }
    return
  }
  func.func @transform_0(%arg0: i32, %arg1: i32) -> (i32, i32) {
    %c0_i32 = arith.constant 0 : i32
    return %arg0, %arg1 : i32, i32
  }
  func.func @transform_1(%arg0: i32, %arg1: i32) -> (i32, i32) {
    %c0_i32 = arith.constant 0 : i32
    %c0_i32_0 = arith.constant 0 : i32
    return %arg1, %c0_i32 : i32, i32
  }
  func.func @transform_2(%arg0: i32, %arg1: i32) -> (i32, i32) {
    %c0_i32 = arith.constant 0 : i32
    %c0_i32_0 = arith.constant 0 : i32
    %c0_i32_1 = arith.constant 0 : i32
    return %c0_i32, %c0_i32_0 : i32, i32
  }
  func.func @transform_3(%arg0: i32, %arg1: i32) -> (i32, i32) {
    %c0_i32 = arith.constant 0 : i32
    %c0_i32_0 = arith.constant 0 : i32
    return %arg0, %c0_i32 : i32, i32
  }
}

</mosaic_0001>

<llo_original>
// kernel: gcn_forward.3
$region0: #{gcn_forward.3}
  #allocation0 [shape = 'u32[]', space=smem, size = 0x4, offset = 0x4, fixed_abs, tag = 'smem constant byte address 0x4 - core index']
  #allocation1 [shape = 'u32[144,128]{1,0:T(1,128)}', space=vmem, size = 0x12000, scoped, tag = 'internal scratch']
  %s0 = inlined_call_operand.vmem [shape: bf16[256,16], index: 0, kind: input, shape index: {}]
  %s1 = inlined_call_operand.vmem [shape: bf16[16,128], index: 1, kind: input, shape index: {}]
  %s2 = inlined_call_operand.vmem [shape: bf16[256,128], index: 2, kind: output, shape index: {}]
  %s3 = sld [smem:[#allocation0]]
  $region41: #{gcn_forward.3} parent=0
    _
  %s5 = ssub.s32 1, %s3
  %s6 = scalar_select 0, %s5, %s3
  loop: start=0, step=1, limit=4
  $region2: #{gcn_forward.3} parent=0 // loop_pre_header
    _
  $region3: #{gcn_forward.3} parent=0 // loop_header
    %s8 = sphi 0, %s12
    %p9 = scmp.ge.s32.totalorder %s8, 4
    %s18 = sphi 0, %s20
    %s21 = sphi 0, %s18
    %s22 = sphi 0, %s21
    %s38 = sphi 0, %s22
    %s42 = sphi 0, %s42
    %s44 = sphi 0, %s42
    %s45 = sphi 0, %s44
    %s59 = sphi 0, %s45
    %s65 = sphi 0, %s67
    %s68 = sphi 0, %s65
    %s69 = sphi 0, %s68
    %s85 = sphi 0, %s69
  $region4: #{gcn_forward.3} parent=0 // loop_header_branch
    %11 = sbr.rel (%p9) target = $region8
  $region5: #{gcn_forward.3} parent=0 // loop_body
    %s13 = ssub.s32 %s8, 1
    %s14 = ssub.s32 %s8, 2
    %s15 = sadd.s32 %s8, 1
    %s16 = ssub.s32 %s8, %s15
    %p17 = scmp.eq.s32.totalorder %s16, 0
    %s19 = sadd.s32 %s18, 1
    %s20 = scalar_select %p17, %s18, %s19
    %p23 = pneg %p17
    %p24 = scmp.eq.s32.totalorder %s8, 1
    %p25 = por %p23, %p24
    %p26 = scmp.ne.s32.totalorder %s18, %s21
    %p27 = scmp.eq.s32.totalorder %s8, 0
    %p28 = por %p26, %p27
    %p29 = scmp.ne.s32.totalorder %s18, %s21
    %p30 = scmp.eq.s32.totalorder %s13, 1
    %p31 = por %p29, %p30
    %p32 = scmp.ne.s32.totalorder %s21, %s22
    %p33 = scmp.eq.s32.totalorder %s13, 0
    %p34 = por %p32, %p33
    %p35 = scmp.ne.s32.totalorder %s21, %s22
    %p36 = scmp.eq.s32.totalorder %s14, 1
    %p37 = por %p35, %p36
    %p39 = scmp.ne.s32.totalorder %s22, %s38
    %p40 = scmp.eq.s32.totalorder %s14, 0
    %p41 = por %p39, %p40
    %s43 = sadd.s32 %s42, 1
    %p46 = scmp.eq.s32.totalorder %s8, 1
    %p47 = scmp.ne.s32.totalorder %s42, %s44
    %p48 = scmp.eq.s32.totalorder %s8, 0
    %p49 = por %p47, %p48
    %p50 = scmp.ne.s32.totalorder %s42, %s44
    %p51 = scmp.eq.s32.totalorder %s13, 1
    %p52 = por %p50, %p51
    %p53 = scmp.ne.s32.totalorder %s44, %s45
    %p54 = scmp.eq.s32.totalorder %s13, 0
    %p55 = por %p53, %p54
    %p56 = scmp.ne.s32.totalorder %s44, %s45
    %p57 = scmp.eq.s32.totalorder %s14, 1
    %p58 = por %p56, %p57
    %p60 = scmp.ne.s32.totalorder %s45, %s59
    %p61 = scmp.eq.s32.totalorder %s14, 0
    %p62 = por %p60, %p61
    %s63 = ssub.s32 %s8, %s15
    %p64 = scmp.eq.s32.totalorder %s63, 0
    %s66 = sadd.s32 %s65, 1
    %s67 = scalar_select %p64, %s65, %s66
    %p70 = pneg %p64
    %p71 = scmp.eq.s32.totalorder %s8, 1
    %p72 = por %p70, %p71
    %p73 = scmp.ne.s32.totalorder %s65, %s68
    %p74 = scmp.eq.s32.totalorder %s8, 0
    %p75 = por %p73, %p74
    %p76 = scmp.ne.s32.totalorder %s65, %s68
    %p77 = scmp.eq.s32.totalorder %s13, 1
    %p78 = por %p76, %p77
    %p79 = scmp.ne.s32.totalorder %s68, %s69
    %p80 = scmp.eq.s32.totalorder %s13, 0
    %p81 = por %p79, %p80
    %p82 = scmp.ne.s32.totalorder %s68, %s69
    %p83 = scmp.eq.s32.totalorder %s14, 1
    %p84 = por %p82, %p83
    %p86 = scmp.ne.s32.totalorder %s69, %s85
    %p87 = scmp.eq.s32.totalorder %s14, 0
    %p88 = por %p86, %p87
    %p89 = scmp.le.s32.totalorder 1, %s8
    %p90 = scmp.lt.s32.totalorder %s8, 3
    %p91 = pnand %p89, %p90
    %p92 = pneg %p91
    // Predicated region
    $region9: #{gcn_forward.3} parent=5 // pred_check
      _
    $region10: #{gcn_forward.3} parent=5 // pred_check_branch
      %94 = sbr.rel (%p91) target = $region12
    $region11: #{gcn_forward.3} parent=5 // pred_region
      %s95 = ssub.s32 %s8, 1
      // Predicated region
      $region13: #{gcn_forward.3} parent=11 // pred_check
        %p96 = pneg %p55
      $region14: #{gcn_forward.3} parent=11 // pred_check_branch
        %98 = sbr.rel (%p96) target = $region16
      $region15: #{gcn_forward.3} parent=11 // pred_region
        _
      $region16: #{gcn_forward.3} parent=11 // pred_fallthru
        _
    $region12: #{gcn_forward.3} parent=5 // pred_fallthru
      _
    %p99 = scmp.lt.s32.totalorder %s8, 2
    // Predicated region
    $region17: #{gcn_forward.3} parent=5 // pred_check
      %p100 = pneg %p99
    $region18: #{gcn_forward.3} parent=5 // pred_check_branch
      %102 = sbr.rel (%p100) target = $region20
    $region19: #{gcn_forward.3} parent=5 // pred_region
      // Predicated region
      $region21: #{gcn_forward.3} parent=19 // pred_check
        %p103 = pneg %p28
      $region22: #{gcn_forward.3} parent=19 // pred_check_branch
        %105 = sbr.rel (%p103) target = $region24
      $region23: #{gcn_forward.3} parent=19 // pred_region
        %s106 = smul.u32 16, %s8
        %p107 = scmp.lt.s32.totalorder %s106, 31
        %s108 = scalar_select %p107, %s106, 31
        %s109 = smul.addr %s108, 4
        %s110 = scalar_lea.vmem %s0, %s109
        %s111 = smul.u32 16, %s8
      $region24: #{gcn_forward.3} parent=19 // pred_fallthru
        _
    $region20: #{gcn_forward.3} parent=5 // pred_fallthru
      _
    %p112 = scmp.le.s32.totalorder 1, %s8
    %p113 = scmp.lt.s32.totalorder %s8, 3
    %p114 = pnand %p112, %p113
    %p115 = pneg %p114
    // Predicated region
    $region25: #{gcn_forward.3} parent=5 // pred_check
      _
    $region26: #{gcn_forward.3} parent=5 // pred_check_branch
      %117 = sbr.rel (%p114) target = $region28
    $region27: #{gcn_forward.3} parent=5 // pred_region
      %s118 = ssub.s32 %s8, 1
      %s119 = smul.u32 16, %s13
      %p120 = scmp.lt.s32.totalorder %s119, 31
      %s121 = scalar_select %p120, %s119, 31
      %s122 = smul.addr %s121, 4
      %s123 = scalar_lea.vmem %s0, %s122
      %p124 = pneg %p34
      %p125 = pneg %p31
      %p126 = pneg %p55
      %p127 = pneg %p52
      %p128 = pneg %p81
      %p129 = pneg %p78
      %s130 = smul.u32 16, %s13
      %p131 = scmp.lt.s32.totalorder %s130, 31
      %s132 = scalar_select %p131, %s130, 31
      %s133 = smul.addr %s132, 4
      %s134 = scalar_lea.vmem %s2, %s133
      %s135 = smul.u32 16, %s13
      %p136 = scmp.lt.s32.totalorder %s135, 31
      %s137 = scalar_select %p136, %s135, 31
      %s138 = smul.addr %s137, 4
      %s139 = scalar_lea.vmem %s0, %s138
      %s140 = smul.u32 16, %s13
      %s141 = smul.u32 16, %s13
      %p142 = scmp.lt.s32.totalorder %s141, 31
      %s143 = scalar_select %p142, %s141, 31
      %s144 = smul.addr %s143, 4
      %s145 = scalar_lea.vmem %s2, %s144
      %s146 = smul.u32 16, %s13
      %v148 = vld [vmem:[%s139] sm:$0xf]
      %v149 = vld [vmem:[%s139 + $0x4] sm:$0xf]
      %v150 = vld [vmem:[%s139 + $0x8] sm:$0xf]
      %v151 = vld [vmem:[%s139 + $0xc] sm:$0xf]
      %v152 = vld [vmem:[%s139 + $0x10] sm:$0xf]
      %v153 = vld [vmem:[%s139 + $0x14] sm:$0xf]
      %v154 = vld [vmem:[%s139 + $0x18] sm:$0xf]
      %v155 = vld [vmem:[%s139 + $0x1c] sm:$0xf]
      %v156 = vld [vmem:[%s139 + $0x20] sm:$0xf]
      %v157 = vld [vmem:[%s139 + $0x24] sm:$0xf]
      %v158 = vld [vmem:[%s139 + $0x28] sm:$0xf]
      %v159 = vld [vmem:[%s139 + $0x2c] sm:$0xf]
      %v160 = vld [vmem:[%s139 + $0x30] sm:$0xf]
      %v161 = vld [vmem:[%s139 + $0x34] sm:$0xf]
      %v162 = vld [vmem:[%s139 + $0x38] sm:$0xf]
      %v163 = vld [vmem:[%s139 + $0x3c] sm:$0xf]
      %v164 = vld [vmem:[%s1] sm:$0xf]
      %v165 = vld [vmem:[%s1 + $0x4] sm:$0xf]
      %v182 = vunpack.c.l.b16 %v148
      %v183 = vunpack.c.l.b16 %v149
      %v184 = vunpack.c.l.b16 %v150
      %v185 = vunpack.c.l.b16 %v151
      %v186 = vunpack.c.l.b16 %v152
      %v187 = vunpack.c.l.b16 %v153
      %v188 = vunpack.c.l.b16 %v154
      %v189 = vunpack.c.l.b16 %v155
      %v190 = vunpack.c.l.b16 %v156
      %v191 = vunpack.c.l.b16 %v157
      %v192 = vunpack.c.l.b16 %v158
      %v193 = vunpack.c.l.b16 %v159
      %v194 = vunpack.c.l.b16 %v160
      %v195 = vunpack.c.l.b16 %v161
      %v196 = vunpack.c.l.b16 %v162
      %v197 = vunpack.c.l.b16 %v163
      %v198 = vpack.c.b16 %v183, %v182
      %v199 = vpack.c.b16 %v185, %v184
      %v200 = vpack.c.b16 %v187, %v186
      %v201 = vpack.c.b16 %v189, %v188
      %v202 = vpack.c.b16 %v191, %v190
      %v203 = vpack.c.b16 %v193, %v192
      %v204 = vpack.c.b16 %v195, %v194
      %v205 = vpack.c.b16 %v197, %v196
      %v208 = vunpack.c.l.b16 %v164
      %v209 = vunpack.c.l.b16 %v165
      %v210 = vpack.c.b16 %v209, %v208
      %vm212 = vcmask 130048
      %v214 = vsel %vm212, %v198, 0
      %v217 = vsel %vm212, %v199, 0
      %v220 = vsel %vm212, %v200, 0
      %v223 = vsel %vm212, %v201, 0
      %v226 = vsel %vm212, %v202, 0
      %v229 = vsel %vm212, %v203, 0
      %v232 = vsel %vm212, %v204, 0
      %v235 = vsel %vm212, %v205, 0
      %237 = vmatprep.subr.bf16.mxu0 0
      %238 = vmatpush1.bf16.msra.mxu0 %v210
      %239 = vmatprep.subr.bf16.mxu0 0
      %240 = vmatpush1.bf16.msra.mxu0 0
      %241 = vmatprep.subr.bf16.mxu0 0
      %242 = vmatpush1.bf16.msra.mxu0 0
      %243 = vmatprep.subr.bf16.mxu0 0
      %244 = vmatpush1.bf16.msra.mxu0 0
      %245 = vmatprep.subr.bf16.mxu0 0
      %246 = vmatpush1.bf16.msra.mxu0 0
      %247 = vmatprep.subr.bf16.mxu0 0
      %248 = vmatpush1.bf16.msra.mxu0 0
      %249 = vmatprep.subr.bf16.mxu0 0
      %250 = vmatpush1.bf16.msra.mxu0 0
      %251 = vmatprep.subr.bf16.mxu0 0
      %252 = vmatpush1.bf16.msra.mxu0 0
      %253 = vmatprep.subr.bf16.mxu0 0
      %254 = vmatpush1.bf16.msra.mxu0 0
      %255 = vmatprep.subr.bf16.mxu0 0
      %256 = vmatpush1.bf16.msra.mxu0 0
      %257 = vmatprep.subr.bf16.mxu0 0
      %258 = vmatpush1.bf16.msra.mxu0 0
      %259 = vmatprep.subr.bf16.mxu0 0
      %260 = vmatpush1.bf16.msra.mxu0 0
      %261 = vmatprep.subr.bf16.mxu0 0
      %262 = vmatpush1.bf16.msra.mxu0 0
      %263 = vmatprep.subr.bf16.mxu0 0
      %264 = vmatpush1.bf16.msra.mxu0 0
      %265 = vmatprep.subr.bf16.mxu0 0
      %266 = vmatpush1.bf16.msra.mxu0 0
      %267 = vmatprep.subr.bf16.mxu0 0
      %268 = vmatpush1.bf16.msra.mxu0 0
      %269 = vmatprep.mubr.bf16.mxu0 0
      %270 = vmatmul.mubr.bf16.gmra.mrb[0].mxu0 %v214
      %v271 = vpop.f32.mrb[0].mxu0
      %v272 = vadd.f32 0.0, %v271
      %v273 = vpop.f32.mrb[0].mxu0
      %v274 = vpop.f32.mrb[0].mxu0
      %v275 = vadd.f32 0.0, %v274
      %v276 = vpop.f32.mrb[0].mxu0
      %277 = vmatprep.mubr.bf16.mxu0 0
      %278 = vmatmul.mubr.bf16.gmra.mrb[0].mxu0 %v217
      %v279 = vpop.f32.mrb[0].mxu0
      %v280 = vadd.f32 0.0, %v279
      %v281 = vpop.f32.mrb[0].mxu0
      %v282 = vpop.f32.mrb[0].mxu0
      %v283 = vadd.f32 0.0, %v282
      %v284 = vpop.f32.mrb[0].mxu0
      %285 = vmatprep.mubr.bf16.mxu0 0
      %286 = vmatmul.mubr.bf16.gmra.mrb[0].mxu0 %v220
      %v287 = vpop.f32.mrb[0].mxu0
      %v288 = vadd.f32 0.0, %v287
      %v289 = vpop.f32.mrb[0].mxu0
      %v290 = vpop.f32.mrb[0].mxu0
      %v291 = vadd.f32 0.0, %v290
      %v292 = vpop.f32.mrb[0].mxu0
      %293 = vmatprep.mubr.bf16.mxu0 0
      %294 = vmatmul.mubr.bf16.gmra.mrb[0].mxu0 %v223
      %v295 = vpop.f32.mrb[0].mxu0
      %v296 = vadd.f32 0.0, %v295
      %v297 = vpop.f32.mrb[0].mxu0
      %v298 = vpop.f32.mrb[0].mxu0
      %v299 = vadd.f32 0.0, %v298
      %v300 = vpop.f32.mrb[0].mxu0
      %301 = vmatprep.mubr.bf16.mxu0 0
      %302 = vmatmul.mubr.bf16.gmra.mrb[0].mxu0 %v226
      %v303 = vpop.f32.mrb[0].mxu0
      %v304 = vadd.f32 0.0, %v303
      %v305 = vpop.f32.mrb[0].mxu0
      %v306 = vpop.f32.mrb[0].mxu0
      %v307 = vadd.f32 0.0, %v306
      %v308 = vpop.f32.mrb[0].mxu0
      %309 = vmatprep.mubr.bf16.mxu0 0
      %310 = vmatmul.mubr.bf16.gmra.mrb[0].mxu0 %v229
      %v311 = vpop.f32.mrb[0].mxu0
      %v312 = vadd.f32 0.0, %v311
      %v313 = vpop.f32.mrb[0].mxu0
      %v314 = vpop.f32.mrb[0].mxu0
      %v315 = vadd.f32 0.0, %v314
      %v316 = vpop.f32.mrb[0].mxu0
      %317 = vmatprep.mubr.bf16.mxu0 0
      %318 = vmatmul.mubr.bf16.gmra.mrb[0].mxu0 %v232
      %v319 = vpop.f32.mrb[0].mxu0
      %v320 = vadd.f32 0.0, %v319
      %v321 = vpop.f32.mrb[0].mxu0
      %v322 = vpop.f32.mrb[0].mxu0
      %v323 = vadd.f32 0.0, %v322
      %v324 = vpop.f32.mrb[0].mxu0
      %325 = vmatprep.mubr.bf16.mxu0 0
      %326 = vmatmul.mubr.bf16.gmra.mrb[0].mxu0 %v235
      %v327 = vpop.f32.mrb[0].mxu0
      %v328 = vadd.f32 0.0, %v327
      %v329 = vpop.f32.mrb[0].mxu0
      %v330 = vpop.f32.mrb[0].mxu0
      %v331 = vadd.f32 0.0, %v330
      %v332 = vpop.f32.mrb[0].mxu0
      %333 = vdwg.mxu0
      %v334 = vpack.c.bf16 %v275, %v272
      %v335 = vpack.c.bf16 %v283, %v280
      %v336 = vpack.c.bf16 %v291, %v288
      %v337 = vpack.c.bf16 %v299, %v296
      %v338 = vpack.c.bf16 %v307, %v304
      %v339 = vpack.c.bf16 %v315, %v312
      %v340 = vpack.c.bf16 %v323, %v320
      %v341 = vpack.c.bf16 %v331, %v328
      %v350 = vunpack.c.l.b16 %v334
      %v351 = vunpack.c.h.b16 %v334
      %v352 = vunpack.c.l.b16 %v335
      %v353 = vunpack.c.h.b16 %v335
      %v354 = vunpack.c.l.b16 %v336
      %v355 = vunpack.c.h.b16 %v336
      %v356 = vunpack.c.l.b16 %v337
      %v357 = vunpack.c.h.b16 %v337
      %v358 = vunpack.c.l.b16 %v338
      %v359 = vunpack.c.h.b16 %v338
      %v360 = vunpack.c.l.b16 %v339
      %v361 = vunpack.c.h.b16 %v339
      %v362 = vunpack.c.l.b16 %v340
      %v363 = vunpack.c.h.b16 %v340
      %v364 = vunpack.c.l.b16 %v341
      %v365 = vunpack.c.h.b16 %v341
      %v366 = vpack.c.b16 %v350, %v350
      %v367 = vpack.c.b16 %v351, %v351
      %v368 = vpack.c.b16 %v352, %v352
      %v369 = vpack.c.b16 %v353, %v353
      %v370 = vpack.c.b16 %v354, %v354
      %v371 = vpack.c.b16 %v355, %v355
      %v372 = vpack.c.b16 %v356, %v356
      %v373 = vpack.c.b16 %v357, %v357
      %v374 = vpack.c.b16 %v358, %v358
      %v375 = vpack.c.b16 %v359, %v359
      %v376 = vpack.c.b16 %v360, %v360
      %v377 = vpack.c.b16 %v361, %v361
      %v378 = vpack.c.b16 %v362, %v362
      %v379 = vpack.c.b16 %v363, %v363
      %v380 = vpack.c.b16 %v364, %v364
      %v381 = vpack.c.b16 %v365, %v365
      %398 = vst [vmem:[%s145] sm:$0xf] %v366
      %399 = vst [vmem:[%s145 + $0x4] sm:$0xf] %v367
      %400 = vst [vmem:[%s145 + $0x8] sm:$0xf] %v368
      %401 = vst [vmem:[%s145 + $0xc] sm:$0xf] %v369
      %402 = vst [vmem:[%s145 + $0x10] sm:$0xf] %v370
      %403 = vst [vmem:[%s145 + $0x14] sm:$0xf] %v371
      %404 = vst [vmem:[%s145 + $0x18] sm:$0xf] %v372
      %405 = vst [vmem:[%s145 + $0x1c] sm:$0xf] %v373
      %406 = vst [vmem:[%s145 + $0x20] sm:$0xf] %v374
      %407 = vst [vmem:[%s145 + $0x24] sm:$0xf] %v375
      %408 = vst [vmem:[%s145 + $0x28] sm:$0xf] %v376
      %409 = vst [vmem:[%s145 + $0x2c] sm:$0xf] %v377
      %410 = vst [vmem:[%s145 + $0x30] sm:$0xf] %v378
      %411 = vst [vmem:[%s145 + $0x34] sm:$0xf] %v379
      %412 = vst [vmem:[%s145 + $0x38] sm:$0xf] %v380
      %413 = vst [vmem:[%s145 + $0x3c] sm:$0xf] %v381
      %s414 = smul.u32 16, %s13
      %p415 = scmp.lt.s32.totalorder %s414, 31
      %s416 = scalar_select %p415, %s414, 31
      %s417 = smul.addr %s416, 4
      %s418 = scalar_lea.vmem %s2, %s417
      // Predicated region
      $region29: #{gcn_forward.3} parent=27 // pred_check
        %p419 = pneg %p78
      $region30: #{gcn_forward.3} parent=27 // pred_check_branch
        %421 = sbr.rel (%p419) target = $region32
      $region31: #{gcn_forward.3} parent=27 // pred_region
        %s422 = smul.u32 16, %s13
      $region32: #{gcn_forward.3} parent=27 // pred_fallthru
        _
    $region28: #{gcn_forward.3} parent=5 // pred_fallthru
      _
    %p423 = scmp.le.s32.totalorder 2, %s8
    // Predicated region
    $region33: #{gcn_forward.3} parent=5 // pred_check
      %p424 = pneg %p423
    $region34: #{gcn_forward.3} parent=5 // pred_check_branch
      %426 = sbr.rel (%p424) target = $region36
    $region35: #{gcn_forward.3} parent=5 // pred_region
      %s427 = ssub.s32 %s8, 2
      // Predicated region
      $region37: #{gcn_forward.3} parent=35 // pred_check
        %p428 = pneg %p84
      $region38: #{gcn_forward.3} parent=35 // pred_check_branch
        %430 = sbr.rel (%p428) target = $region40
      $region39: #{gcn_forward.3} parent=35 // pred_region
        %s431 = smul.u32 16, %s14
        %p432 = scmp.lt.s32.totalorder %s431, 31
        %s433 = scalar_select %p432, %s431, 31
        %s434 = smul.addr %s433, 4
        %s435 = scalar_lea.vmem %s2, %s434
      $region40: #{gcn_forward.3} parent=35 // pred_fallthru
        _
    $region36: #{gcn_forward.3} parent=5 // pred_fallthru
      _
  $region6: #{gcn_forward.3} parent=0 // loop_footer
    %s12 = sadd.s32 1, %s8
  $region7: #{gcn_forward.3} parent=0 // loop_footer_branch
    %7 = sbr.rel target = $region3
  $region8: #{gcn_forward.3} parent=0 // loop_exit
    _

// kernel: gcn_forward.5
$region0: #{gcn_forward.5}
  #allocation0 [shape = 'u32[]', space=smem, size = 0x4, offset = 0x4, fixed_abs, tag = 'smem constant byte address 0x4 - core index']
  #allocation1 [shape = 'u32[144,128]{1,0:T(1,128)}', space=vmem, size = 0x12000, scoped, tag = 'internal scratch']
  #allocation2 [shape = 'f32[128,128]{1,0:T(8,128)}', space=vmem, size = 0x10000, scoped, tag = 'scratch operand']
  %s0 = inlined_call_operand.vmem [shape: bf16[256,256], index: 0, kind: input, shape index: {}]
  %s1 = inlined_call_operand.vmem [shape: bf16[256,128], index: 1, kind: input, shape index: {}]
  %s2 = inlined_call_operand.vmem [shape: f32[1,128], index: 2, kind: input, shape index: {}]
  %s3 = inlined_call_operand.vmem [shape: f32[256,128], index: 3, kind: output, shape index: {}]
  %s4 = sld [smem:[#allocation0]]
  $region57: #{gcn_forward.5} parent=0
    _
  %s6 = ssub.s32 1, %s4
  %s7 = scalar_select 0, %s6, %s4
  loop: start=0, step=1, limit=4
  $region2: #{gcn_forward.5} parent=0 // loop_pre_header
    _
  $region3: #{gcn_forward.5} parent=0 // loop_header
    %s9 = sphi 0, %s13
    %p10 = scmp.ge.s32.totalorder %s9, 4
    %s16 = sphi 0, %s28
    %s17 = sphi 0, %s24
    %s18 = sphi 0, %s16
    %s19 = sphi 0, %s17
    %s20 = sphi 0, %s18
    %s21 = sphi 0, %s19
    %s33 = sphi 0, %s35
    %s36 = sphi 0, %s33
    %s37 = sphi 0, %s36
    %s53 = sphi 0, %s37
    %s59 = sphi 0, %s61
    %s62 = sphi 0, %s59
    %s63 = sphi 0, %s62
    %s79 = sphi 0, %s63
    %s83 = sphi 0, %s83
    %s85 = sphi 0, %s83
    %s86 = sphi 0, %s85
    %s100 = sphi 0, %s86
    %s106 = sphi 0, %s108
    %s109 = sphi 0, %s106
    %s110 = sphi 0, %s109
    %s126 = sphi 0, %s110
  $region4: #{gcn_forward.5} parent=0 // loop_header_branch
    %12 = sbr.rel (%p10) target = $region8
  $region5: #{gcn_forward.5} parent=0 // loop_body
    %s14 = ssub.s32 %s9, 1
    %s15 = ssub.s32 %s9, 2
    %s22 = sadd.s32 1, %s17
    %p23 = scmp.ge.s32.totalorder %s22, 1
    %s24 = scalar_select %p23, 0, %s22
    %s25 = sadd.s32 1, %s16
    %s26 = scalar_select %p23, %s25, %s16
    %p27 = scmp.ge.s32.totalorder %s26, 2
    %s28 = scalar_select %p27, 0, %s26
    %s29 = ssub.s32 %s16, %s28
    %s30 = ssub.s32 %s17, %s24
    %s31 = sor.u32 %s29, %s30
    %p32 = scmp.eq.s32.totalorder %s31, 0
    %s34 = sadd.s32 %s33, 1
    %s35 = scalar_select %p32, %s33, %s34
    %p38 = pneg %p32
    %p39 = scmp.eq.s32.totalorder %s9, 1
    %p40 = por %p38, %p39
    %p41 = scmp.ne.s32.totalorder %s33, %s36
    %p42 = scmp.eq.s32.totalorder %s9, 0
    %p43 = por %p41, %p42
    %p44 = scmp.ne.s32.totalorder %s33, %s36
    %p45 = scmp.eq.s32.totalorder %s14, 1
    %p46 = por %p44, %p45
    %p47 = scmp.ne.s32.totalorder %s36, %s37
    %p48 = scmp.eq.s32.totalorder %s14, 0
    %p49 = por %p47, %p48
    %p50 = scmp.ne.s32.totalorder %s36, %s37
    %p51 = scmp.eq.s32.totalorder %s15, 1
    %p52 = por %p50, %p51
    %p54 = scmp.ne.s32.totalorder %s37, %s53
    %p55 = scmp.eq.s32.totalorder %s15, 0
    %p56 = por %p54, %p55
    %s57 = ssub.s32 %s17, %s24
    %p58 = scmp.eq.s32.totalorder %s57, 0
    %s60 = sadd.s32 %s59, 1
    %s61 = scalar_select %p58, %s59, %s60
    %p64 = pneg %p58
    %p65 = scmp.eq.s32.totalorder %s9, 1
    %p66 = por %p64, %p65
    %p67 = scmp.ne.s32.totalorder %s59, %s62
    %p68 = scmp.eq.s32.totalorder %s9, 0
    %p69 = por %p67, %p68
    %p70 = scmp.ne.s32.totalorder %s59, %s62
    %p71 = scmp.eq.s32.totalorder %s14, 1
    %p72 = por %p70, %p71
    %p73 = scmp.ne.s32.totalorder %s62, %s63
    %p74 = scmp.eq.s32.totalorder %s14, 0
    %p75 = por %p73, %p74
    %p76 = scmp.ne.s32.totalorder %s62, %s63
    %p77 = scmp.eq.s32.totalorder %s15, 1
    %p78 = por %p76, %p77
    %p80 = scmp.ne.s32.totalorder %s63, %s79
    %p81 = scmp.eq.s32.totalorder %s15, 0
    %p82 = por %p80, %p81
    %s84 = sadd.s32 %s83, 1
    %p87 = scmp.eq.s32.totalorder %s9, 1
    %p88 = scmp.ne.s32.totalorder %s83, %s85
    %p89 = scmp.eq.s32.totalorder %s9, 0
    %p90 = por %p88, %p89
    %p91 = scmp.ne.s32.totalorder %s83, %s85
    %p92 = scmp.eq.s32.totalorder %s14, 1
    %p93 = por %p91, %p92
    %p94 = scmp.ne.s32.totalorder %s85, %s86
    %p95 = scmp.eq.s32.totalorder %s14, 0
    %p96 = por %p94, %p95
    %p97 = scmp.ne.s32.totalorder %s85, %s86
    %p98 = scmp.eq.s32.totalorder %s15, 1
    %p99 = por %p97, %p98
    %p101 = scmp.ne.s32.totalorder %s86, %s100
    %p102 = scmp.eq.s32.totalorder %s15, 0
    %p103 = por %p101, %p102
    %s104 = ssub.s32 %s16, %s28
    %p105 = scmp.eq.s32.totalorder %s104, 0
    %s107 = sadd.s32 %s106, 1
    %s108 = scalar_select %p105, %s106, %s107
    %p111 = pneg %p105
    %p112 = scmp.eq.s32.totalorder %s9, 1
    %p113 = por %p111, %p112
    %p114 = scmp.ne.s32.totalorder %s106, %s109
    %p115 = scmp.eq.s32.totalorder %s9, 0
    %p116 = por %p114, %p115
    %p117 = scmp.ne.s32.totalorder %s106, %s109
    %p118 = scmp.eq.s32.totalorder %s14, 1
    %p119 = por %p117, %p118
    %p120 = scmp.ne.s32.totalorder %s109, %s110
    %p121 = scmp.eq.s32.totalorder %s14, 0
    %p122 = por %p120, %p121
    %p123 = scmp.ne.s32.totalorder %s109, %s110
    %p124 = scmp.eq.s32.totalorder %s15, 1
    %p125 = por %p123, %p124
    %p127 = scmp.ne.s32.totalorder %s110, %s126
    %p128 = scmp.eq.s32.totalorder %s15, 0
    %p129 = por %p127, %p128
    %p130 = scmp.le.s32.totalorder 1, %s9
    %p131 = scmp.lt.s32.totalorder %s9, 3
    %p132 = pnand %p130, %p131
    %p133 = pneg %p132
    // Predicated region
    $region9: #{gcn_forward.5} parent=5 // pred_check
      _
    $region10: #{gcn_forward.5} parent=5 // pred_check_branch
      %135 = sbr.rel (%p132) target = $region12
    $region11: #{gcn_forward.5} parent=5 // pred_region
      %s136 = ssub.s32 %s9, 1
      // Predicated region
      $region13: #{gcn_forward.5} parent=11 // pred_check
        %p137 = pneg %p75
      $region14: #{gcn_forward.5} parent=11 // pred_check_branch
        %139 = sbr.rel (%p137) target = $region16
      $region15: #{gcn_forward.5} parent=11 // pred_region
        %s140 = smul.u32 32, %s19
        %p141 = scmp.lt.s32.totalorder %s140, 31
        %s142 = scalar_select %p141, %s140, 31
        %s143 = smul.addr %s142, 4
        %s144 = scalar_lea.vmem %s1, %s143
        %s145 = smul.u32 32, %s19
      $region16: #{gcn_forward.5} parent=11 // pred_fallthru
        _
      // Predicated region
      $region17: #{gcn_forward.5} parent=11 // pred_check
        %p146 = pneg %p96
      $region18: #{gcn_forward.5} parent=11 // pred_check_branch
        %148 = sbr.rel (%p146) target = $region20
      $region19: #{gcn_forward.5} parent=11 // pred_region
        _
      $region20: #{gcn_forward.5} parent=11 // pred_fallthru
        _
    $region12: #{gcn_forward.5} parent=5 // pred_fallthru
      _
    %p149 = scmp.lt.s32.totalorder %s9, 2
    // Predicated region
    $region21: #{gcn_forward.5} parent=5 // pred_check
      %p150 = pneg %p149
    $region22: #{gcn_forward.5} parent=5 // pred_check_branch
      %152 = sbr.rel (%p150) target = $region24
    $region23: #{gcn_forward.5} parent=5 // pred_region
      // Predicated region
      $region25: #{gcn_forward.5} parent=23 // pred_check
        %p153 = pneg %p43
      $region26: #{gcn_forward.5} parent=23 // pred_check_branch
        %155 = sbr.rel (%p153) target = $region28
      $region27: #{gcn_forward.5} parent=23 // pred_region
        %s156 = smul.u32 16, %s16
        %s157 = smul.u32 2, %s17
        %p158 = scmp.lt.s32.totalorder %s156, 31
        %s159 = scalar_select %p158, %s156, 31
        %p160 = scmp.lt.s32.totalorder %s157, 1
        %s161 = scalar_select %p160, %s157, 1
        %s162 = smul.addr %s159, 2
        %s163 = sadd.s32 %s161, %s162
        %s164 = smul.addr %s163, 4
        %s165 = scalar_lea.vmem %s0, %s164
        %s166 = smul.u32 16, %s16
        %s167 = smul.u32 2, %s17
      $region28: #{gcn_forward.5} parent=23 // pred_fallthru
        _
    $region24: #{gcn_forward.5} parent=5 // pred_fallthru
      _
    %p168 = scmp.le.s32.totalorder 1, %s9
    %p169 = scmp.lt.s32.totalorder %s9, 3
    %p170 = pnand %p168, %p169
    %p171 = pneg %p170
    // Predicated region
    $region29: #{gcn_forward.5} parent=5 // pred_check
      _
    $region30: #{gcn_forward.5} parent=5 // pred_check_branch
      %173 = sbr.rel (%p170) target = $region32
    $region31: #{gcn_forward.5} parent=5 // pred_region
      %s174 = ssub.s32 %s9, 1
      %s175 = smul.u32 16, %s18
      %s176 = smul.u32 2, %s19
      %p177 = scmp.lt.s32.totalorder %s175, 31
      %s178 = scalar_select %p177, %s175, 31
      %p179 = scmp.lt.s32.totalorder %s176, 1
      %s180 = scalar_select %p179, %s176, 1
      %s181 = smul.addr %s178, 2
      %s182 = sadd.s32 %s180, %s181
      %s183 = smul.addr %s182, 4
      %s184 = scalar_lea.vmem %s0, %s183
      %p185 = pneg %p49
      %p186 = pneg %p46
      %s187 = smul.u32 32, %s19
      %p188 = scmp.lt.s32.totalorder %s187, 31
      %s189 = scalar_select %p188, %s187, 31
      %s190 = smul.addr %s189, 4
      %s191 = scalar_lea.vmem %s1, %s190
      %p192 = pneg %p75
      %p193 = pneg %p72
      %p194 = pneg %p96
      %p195 = pneg %p93
      %p196 = pneg %p122
      %p197 = pneg %p119
      %s198 = smul.u32 16, %s18
      %p199 = scmp.lt.s32.totalorder %s198, 31
      %s200 = scalar_select %p199, %s198, 31
      %s201 = smul.addr %s200, 8
      %s202 = scalar_lea.vmem %s3, %s201
      %s203 = smul.u32 16, %s18
      %s204 = smul.u32 2, %s19
      %p205 = scmp.lt.s32.totalorder %s203, 31
      %s206 = scalar_select %p205, %s203, 31
      %p207 = scmp.lt.s32.totalorder %s204, 1
      %s208 = scalar_select %p207, %s204, 1
      %s209 = smul.addr %s206, 2
      %s210 = sadd.s32 %s208, %s209
      %s211 = smul.addr %s210, 4
      %s212 = scalar_lea.vmem %s0, %s211
      %s213 = smul.u32 16, %s18
      %s214 = smul.u32 2, %s19
      %s215 = smul.u32 32, %s19
      %p216 = scmp.lt.s32.totalorder %s215, 31
      %s217 = scalar_select %p216, %s215, 31
      %s218 = smul.addr %s217, 4
      %s219 = scalar_lea.vmem %s1, %s218
      %s220 = smul.u32 32, %s19
      %s221 = smul.u32 16, %s18
      %p222 = scmp.lt.s32.totalorder %s221, 31
      %s223 = scalar_select %p222, %s221, 31
      %s224 = smul.addr %s223, 8
      %s225 = scalar_lea.vmem %s3, %s224
      %s226 = smul.u32 16, %s18
      %v228 = vld [vmem:[%s212] sm:$0xff]
      %v229 = vld [vmem:[%s212 + $0x8] sm:$0xff]
      %v230 = vld [vmem:[%s212 + $0x10] sm:$0xff]
      %v231 = vld [vmem:[%s212 + $0x18] sm:$0xff]
      %v232 = vld [vmem:[%s212 + $0x20] sm:$0xff]
      %v233 = vld [vmem:[%s212 + $0x28] sm:$0xff]
      %v234 = vld [vmem:[%s212 + $0x30] sm:$0xff]
      %v235 = vld [vmem:[%s212 + $0x38] sm:$0xff]
      %v236 = vld [vmem:[%s212 + $0x40] sm:$0xff]
      %v237 = vld [vmem:[%s212 + $0x48] sm:$0xff]
      %v238 = vld [vmem:[%s212 + $0x50] sm:$0xff]
      %v239 = vld [vmem:[%s212 + $0x58] sm:$0xff]
      %v240 = vld [vmem:[%s212 + $0x60] sm:$0xff]
      %v241 = vld [vmem:[%s212 + $0x68] sm:$0xff]
      %v242 = vld [vmem:[%s212 + $0x70] sm:$0xff]
      %v243 = vld [vmem:[%s212 + $0x78] sm:$0xff]
      %v244 = vld [vmem:[%s219] sm:$0xf]
      %v245 = vld [vmem:[%s219 + $0x4] sm:$0xf]
      %v246 = vld [vmem:[%s219 + $0x8] sm:$0xf]
      %v247 = vld [vmem:[%s219 + $0xc] sm:$0xf]
      %v248 = vld [vmem:[%s219 + $0x10] sm:$0xf]
      %v249 = vld [vmem:[%s219 + $0x14] sm:$0xf]
      %v250 = vld [vmem:[%s219 + $0x18] sm:$0xf]
      %v251 = vld [vmem:[%s219 + $0x1c] sm:$0xf]
      %v252 = vld [vmem:[%s219 + $0x20] sm:$0xf]
      %v253 = vld [vmem:[%s219 + $0x24] sm:$0xf]
      %v254 = vld [vmem:[%s219 + $0x28] sm:$0xf]
      %v255 = vld [vmem:[%s219 + $0x2c] sm:$0xf]
      %v256 = vld [vmem:[%s219 + $0x30] sm:$0xf]
      %v257 = vld [vmem:[%s219 + $0x34] sm:$0xf]
      %v258 = vld [vmem:[%s219 + $0x38] sm:$0xf]
      %v259 = vld [vmem:[%s219 + $0x3c] sm:$0xf]
      %v260 = vld [vmem:[%s219 + $0x40] sm:$0xf]
      %v261 = vld [vmem:[%s219 + $0x44] sm:$0xf]
      %v262 = vld [vmem:[%s219 + $0x48] sm:$0xf]
      %v263 = vld [vmem:[%s219 + $0x4c] sm:$0xf]
      %v264 = vld [vmem:[%s219 + $0x50] sm:$0xf]
      %v265 = vld [vmem:[%s219 + $0x54] sm:$0xf]
      %v266 = vld [vmem:[%s219 + $0x58] sm:$0xf]
      %v267 = vld [vmem:[%s219 + $0x5c] sm:$0xf]
      %v268 = vld [vmem:[%s219 + $0x60] sm:$0xf]
      %v269 = vld [vmem:[%s219 + $0x64] sm:$0xf]
      %v270 = vld [vmem:[%s219 + $0x68] sm:$0xf]
      %v271 = vld [vmem:[%s219 + $0x6c] sm:$0xf]
      %v272 = vld [vmem:[%s219 + $0x70] sm:$0xf]
      %v273 = vld [vmem:[%s219 + $0x74] sm:$0xf]
      %v274 = vld [vmem:[%s219 + $0x78] sm:$0xf]
      %v275 = vld [vmem:[%s219 + $0x7c] sm:$0xf]
      %v292 = vunpack.c.l.b16 %v228
      %v293 = vunpack.c.h.b16 %v228
      %v294 = vunpack.c.l.b16 %v229
      %v295 = vunpack.c.h.b16 %v229
      %v296 = vunpack.c.l.b16 %v230
      %v297 = vunpack.c.h.b16 %v230
      %v298 = vunpack.c.l.b16 %v231
      %v299 = vunpack.c.h.b16 %v231
      %v300 = vunpack.c.l.b16 %v232
      %v301 = vunpack.c.h.b16 %v232
      %v302 = vunpack.c.l.b16 %v233
      %v303 = vunpack.c.h.b16 %v233
      %v304 = vunpack.c.l.b16 %v234
      %v305 = vunpack.c.h.b16 %v234
      %v306 = vunpack.c.l.b16 %v235
      %v307 = vunpack.c.h.b16 %v235
      %v308 = vunpack.c.l.b16 %v236
      %v309 = vunpack.c.h.b16 %v236
      %v310 = vunpack.c.l.b16 %v237
      %v311 = vunpack.c.h.b16 %v237
      %v312 = vunpack.c.l.b16 %v238
      %v313 = vunpack.c.h.b16 %v238
      %v314 = vunpack.c.l.b16 %v239
      %v315 = vunpack.c.h.b16 %v239
      %v316 = vunpack.c.l.b16 %v240
      %v317 = vunpack.c.h.b16 %v240
      %v318 = vunpack.c.l.b16 %v241
      %v319 = vunpack.c.h.b16 %v241
      %v320 = vunpack.c.l.b16 %v242
      %v321 = vunpack.c.h.b16 %v242
      %v322 = vunpack.c.l.b16 %v243
      %v323 = vunpack.c.h.b16 %v243
      %v324 = vpack.c.b16 %v294, %v292
      %v325 = vpack.c.b16 %v295, %v293
      %v326 = vpack.c.b16 %v298, %v296
      %v327 = vpack.c.b16 %v299, %v297
      %v328 = vpack.c.b16 %v302, %v300
      %v329 = vpack.c.b16 %v303, %v301
      %v330 = vpack.c.b16 %v306, %v304
      %v331 = vpack.c.b16 %v307, %v305
      %v332 = vpack.c.b16 %v310, %v308
      %v333 = vpack.c.b16 %v311, %v309
      %v334 = vpack.c.b16 %v314, %v312
      %v335 = vpack.c.b16 %v315, %v313
      %v336 = vpack.c.b16 %v318, %v316
      %v337 = vpack.c.b16 %v319, %v317
      %v338 = vpack.c.b16 %v322, %v320
      %v339 = vpack.c.b16 %v323, %v321
      %v388 = vunpack.c.l.b16 %v244
      %v389 = vunpack.c.l.b16 %v245
      %v390 = vunpack.c.l.b16 %v246
      %v391 = vunpack.c.l.b16 %v247
      %v392 = vunpack.c.l.b16 %v248
      %v393 = vunpack.c.l.b16 %v249
      %v394 = vunpack.c.l.b16 %v250
      %v395 = vunpack.c.l.b16 %v251
      %v396 = vunpack.c.l.b16 %v252
      %v397 = vunpack.c.l.b16 %v253
      %v398 = vunpack.c.l.b16 %v254
      %v399 = vunpack.c.l.b16 %v255
      %v400 = vunpack.c.l.b16 %v256
      %v401 = vunpack.c.l.b16 %v257
      %v402 = vunpack.c.l.b16 %v258
      %v403 = vunpack.c.l.b16 %v259
      %v404 = vunpack.c.l.b16 %v260
      %v405 = vunpack.c.l.b16 %v261
      %v406 = vunpack.c.l.b16 %v262
      %v407 = vunpack.c.l.b16 %v263
      %v408 = vunpack.c.l.b16 %v264
      %v409 = vunpack.c.l.b16 %v265
      %v410 = vunpack.c.l.b16 %v266
      %v411 = vunpack.c.l.b16 %v267
      %v412 = vunpack.c.l.b16 %v268
      %v413 = vunpack.c.l.b16 %v269
      %v414 = vunpack.c.l.b16 %v270
      %v415 = vunpack.c.l.b16 %v271
      %v416 = vunpack.c.l.b16 %v272
      %v417 = vunpack.c.l.b16 %v273
      %v418 = vunpack.c.l.b16 %v274
      %v419 = vunpack.c.l.b16 %v275
      %v420 = vpack.c.b16 %v389, %v388
      %v421 = vpack.c.b16 %v391, %v390
      %v422 = vpack.c.b16 %v393, %v392
      %v423 = vpack.c.b16 %v395, %v394
      %v424 = vpack.c.b16 %v397, %v396
      %v425 = vpack.c.b16 %v399, %v398
      %v426 = vpack.c.b16 %v401, %v400
      %v427 = vpack.c.b16 %v403, %v402
      %v428 = vpack.c.b16 %v405, %v404
      %v429 = vpack.c.b16 %v407, %v406
      %v430 = vpack.c.b16 %v409, %v408
      %v431 = vpack.c.b16 %v411, %v410
      %v432 = vpack.c.b16 %v413, %v412
      %v433 = vpack.c.b16 %v415, %v414
      %v434 = vpack.c.b16 %v417, %v416
      %v435 = vpack.c.b16 %v419, %v418
      %452 = vmatprep.subr.bf16.mxu0 0
      %453 = vmatpush1.bf16.msra.mxu0 %v420
      %454 = vmatprep.subr.bf16.mxu0 0
      %455 = vmatpush1.bf16.msra.mxu0 %v421
      %456 = vmatprep.subr.bf16.mxu0 0
      %457 = vmatpush1.bf16.msra.mxu0 %v422
      %458 = vmatprep.subr.bf16.mxu0 0
      %459 = vmatpush1.bf16.msra.mxu0 %v423
      %460 = vmatprep.subr.bf16.mxu0 0
      %461 = vmatpush1.bf16.msra.mxu0 %v424
      %462 = vmatprep.subr.bf16.mxu0 0
      %463 = vmatpush1.bf16.msra.mxu0 %v425
      %464 = vmatprep.subr.bf16.mxu0 0
      %465 = vmatpush1.bf16.msra.mxu0 %v426
      %466 = vmatprep.subr.bf16.mxu0 0
      %467 = vmatpush1.bf16.msra.mxu0 %v427
      %468 = vmatprep.subr.bf16.mxu0 0
      %469 = vmatpush1.bf16.msra.mxu0 %v428
      %470 = vmatprep.subr.bf16.mxu0 0
      %471 = vmatpush1.bf16.msra.mxu0 %v429
      %472 = vmatprep.subr.bf16.mxu0 0
      %473 = vmatpush1.bf16.msra.mxu0 %v430
      %474 = vmatprep.subr.bf16.mxu0 0
      %475 = vmatpush1.bf16.msra.mxu0 %v431
      %476 = vmatprep.subr.bf16.mxu0 0
      %477 = vmatpush1.bf16.msra.mxu0 %v432
      %478 = vmatprep.subr.bf16.mxu0 0
      %479 = vmatpush1.bf16.msra.mxu0 %v433
      %480 = vmatprep.subr.bf16.mxu0 0
      %481 = vmatpush1.bf16.msra.mxu0 %v434
      %482 = vmatprep.subr.bf16.mxu0 0
      %483 = vmatpush1.bf16.msra.mxu0 %v435
      %484 = vmatprep.mubr.bf16.mxu0 %v325
      %485 = vmatmul.mubr.bf16.gmra.mrb[0].mxu0 %v324
      %v486 = vpop.f32.mrb[0].mxu0
      %v487 = vadd.f32 0.0, %v486
      %v488 = vpop.f32.mrb[0].mxu0
      %v489 = vpop.f32.mrb[0].mxu0
      %v490 = vadd.f32 0.0, %v489
      %v491 = vpop.f32.mrb[0].mxu0
      %492 = vmatprep.mubr.bf16.mxu0 %v327
      %493 = vmatmul.mubr.bf16.gmra.mrb[0].mxu0 %v326
      %v494 = vpop.f32.mrb[0].mxu0
      %v495 = vadd.f32 0.0, %v494
      %v496 = vpop.f32.mrb[0].mxu0
      %v497 = vpop.f32.mrb[0].mxu0
      %v498 = vadd.f32 0.0, %v497
      %v499 = vpop.f32.mrb[0].mxu0
      %500 = vmatprep.mubr.bf16.mxu0 %v329
      %501 = vmatmul.mubr.bf16.gmra.mrb[0].mxu0 %v328
      %v502 = vpop.f32.mrb[0].mxu0
      %v503 = vadd.f32 0.0, %v502
      %v504 = vpop.f32.mrb[0].mxu0
      %v505 = vpop.f32.mrb[0].mxu0
      %v506 = vadd.f32 0.0, %v505
      %v507 = vpop.f32.mrb[0].mxu0
      %508 = vmatprep.mubr.bf16.mxu0 %v331
      %509 = vmatmul.mubr.bf16.gmra.mrb[0].mxu0 %v330
      %v510 = vpop.f32.mrb[0].mxu0
      %v511 = vadd.f32 0.0, %v510
      %v512 = vpop.f32.mrb[0].mxu0
      %v513 = vpop.f32.mrb[0].mxu0
      %v514 = vadd.f32 0.0, %v513
      %v515 = vpop.f32.mrb[0].mxu0
      %516 = vmatprep.mubr.bf16.mxu0 %v333
      %517 = vmatmul.mubr.bf16.gmra.mrb[0].mxu0 %v332
      %v518 = vpop.f32.mrb[0].mxu0
      %v519 = vadd.f32 0.0, %v518
      %v520 = vpop.f32.mrb[0].mxu0
      %v521 = vpop.f32.mrb[0].mxu0
      %v522 = vadd.f32 0.0, %v521
      %v523 = vpop.f32.mrb[0].mxu0
      %524 = vmatprep.mubr.bf16.mxu0 %v335
      %525 = vmatmul.mubr.bf16.gmra.mrb[0].mxu0 %v334
      %v526 = vpop.f32.mrb[0].mxu0
      %v527 = vadd.f32 0.0, %v526
      %v528 = vpop.f32.mrb[0].mxu0
      %v529 = vpop.f32.mrb[0].mxu0
      %v530 = vadd.f32 0.0, %v529
      %v531 = vpop.f32.mrb[0].mxu0
      %532 = vmatprep.mubr.bf16.mxu0 %v337
      %533 = vmatmul.mubr.bf16.gmra.mrb[0].mxu0 %v336
      %v534 = vpop.f32.mrb[0].mxu0
      %v535 = vadd.f32 0.0, %v534
      %v536 = vpop.f32.mrb[0].mxu0
      %v537 = vpop.f32.mrb[0].mxu0
      %v538 = vadd.f32 0.0, %v537
      %v539 = vpop.f32.mrb[0].mxu0
      %540 = vmatprep.mubr.bf16.mxu0 %v339
      %541 = vmatmul.mubr.bf16.gmra.mrb[0].mxu0 %v338
      %v542 = vpop.f32.mrb[0].mxu0
      %v543 = vadd.f32 0.0, %v542
      %v544 = vpop.f32.mrb[0].mxu0
      %v545 = vpop.f32.mrb[0].mxu0
      %v546 = vadd.f32 0.0, %v545
      %v547 = vpop.f32.mrb[0].mxu0
      %548 = vdwg.mxu0
      %p549 = scmp.eq.s32.totalorder %s19, 0
      // Predicated region
      $region33: #{gcn_forward.5} parent=31 // pred_check
        %p550 = pneg %p549
      $region34: #{gcn_forward.5} parent=31 // pred_check_branch
        %552 = sbr.rel (%p550) target = $region36
      $region35: #{gcn_forward.5} parent=31 // pred_region
        %553 = vst [vmem:[#allocation2] sm:$0xff] %v487
        %554 = vst [vmem:[#allocation2 + $0x8] sm:$0xff] %v490
        %555 = vst [vmem:[#allocation2 + $0x10] sm:$0xff] %v495
        %556 = vst [vmem:[#allocation2 + $0x18] sm:$0xff] %v498
        %557 = vst [vmem:[#allocation2 + $0x20] sm:$0xff] %v503
        %558 = vst [vmem:[#allocation2 + $0x28] sm:$0xff] %v506
        %559 = vst [vmem:[#allocation2 + $0x30] sm:$0xff] %v511
        %560 = vst [vmem:[#allocation2 + $0x38] sm:$0xff] %v514
        %561 = vst [vmem:[#allocation2 + $0x40] sm:$0xff] %v519
        %562 = vst [vmem:[#allocation2 + $0x48] sm:$0xff] %v522
        %563 = vst [vmem:[#allocation2 + $0x50] sm:$0xff] %v527
        %564 = vst [vmem:[#allocation2 + $0x58] sm:$0xff] %v530
        %565 = vst [vmem:[#allocation2 + $0x60] sm:$0xff] %v535
        %566 = vst [vmem:[#allocation2 + $0x68] sm:$0xff] %v538
        %567 = vst [vmem:[#allocation2 + $0x70] sm:$0xff] %v543
        %568 = vst [vmem:[#allocation2 + $0x78] sm:$0xff] %v546
      $region36: #{gcn_forward.5} parent=31 // pred_fallthru
        _
      %p569 = scmp.ne.s32.totalorder %s19, 0
      // Predicated region
      $region37: #{gcn_forward.5} parent=31 // pred_check
        %p570 = pneg %p569
      $region38: #{gcn_forward.5} parent=31 // pred_check_branch
        %572 = sbr.rel (%p570) target = $region40
      $region39: #{gcn_forward.5} parent=31 // pred_region
        %v573 = vld [vmem:[#allocation2] sm:$0xff]
        %v574 = vld [vmem:[#allocation2 + $0x8] sm:$0xff]
        %v575 = vld [vmem:[#allocation2 + $0x10] sm:$0xff]
        %v576 = vld [vmem:[#allocation2 + $0x18] sm:$0xff]
        %v577 = vld [vmem:[#allocation2 + $0x20] sm:$0xff]
        %v578 = vld [vmem:[#allocation2 + $0x28] sm:$0xff]
        %v579 = vld [vmem:[#allocation2 + $0x30] sm:$0xff]
        %v580 = vld [vmem:[#allocation2 + $0x38] sm:$0xff]
        %v581 = vld [vmem:[#allocation2 + $0x40] sm:$0xff]
        %v582 = vld [vmem:[#allocation2 + $0x48] sm:$0xff]
        %v583 = vld [vmem:[#allocation2 + $0x50] sm:$0xff]
        %v584 = vld [vmem:[#allocation2 + $0x58] sm:$0xff]
        %v585 = vld [vmem:[#allocation2 + $0x60] sm:$0xff]
        %v586 = vld [vmem:[#allocation2 + $0x68] sm:$0xff]
        %v587 = vld [vmem:[#allocation2 + $0x70] sm:$0xff]
        %v588 = vld [vmem:[#allocation2 + $0x78] sm:$0xff]
        %v589 = vadd.f32 %v573, %v487
        %v590 = vadd.f32 %v574, %v490
        %v591 = vadd.f32 %v575, %v495
        %v592 = vadd.f32 %v576, %v498
        %v593 = vadd.f32 %v577, %v503
        %v594 = vadd.f32 %v578, %v506
        %v595 = vadd.f32 %v579, %v511
        %v596 = vadd.f32 %v580, %v514
        %v597 = vadd.f32 %v581, %v519
        %v598 = vadd.f32 %v582, %v522
        %v599 = vadd.f32 %v583, %v527
        %v600 = vadd.f32 %v584, %v530
        %v601 = vadd.f32 %v585, %v535
        %v602 = vadd.f32 %v586, %v538
        %v603 = vadd.f32 %v587, %v543
        %v604 = vadd.f32 %v588, %v546
        %605 = vst [vmem:[#allocation2] sm:$0xff] %v589
        %606 = vst [vmem:[#allocation2 + $0x8] sm:$0xff] %v590
        %607 = vst [vmem:[#allocation2 + $0x10] sm:$0xff] %v591
        %608 = vst [vmem:[#allocation2 + $0x18] sm:$0xff] %v592
        %609 = vst [vmem:[#allocation2 + $0x20] sm:$0xff] %v593
        %610 = vst [vmem:[#allocation2 + $0x28] sm:$0xff] %v594
        %611 = vst [vmem:[#allocation2 + $0x30] sm:$0xff] %v595
        %612 = vst [vmem:[#allocation2 + $0x38] sm:$0xff] %v596
        %613 = vst [vmem:[#allocation2 + $0x40] sm:$0xff] %v597
        %614 = vst [vmem:[#allocation2 + $0x48] sm:$0xff] %v598
        %615 = vst [vmem:[#allocation2 + $0x50] sm:$0xff] %v599
        %616 = vst [vmem:[#allocation2 + $0x58] sm:$0xff] %v600
        %617 = vst [vmem:[#allocation2 + $0x60] sm:$0xff] %v601
        %618 = vst [vmem:[#allocation2 + $0x68] sm:$0xff] %v602
        %619 = vst [vmem:[#allocation2 + $0x70] sm:$0xff] %v603
        %620 = vst [vmem:[#allocation2 + $0x78] sm:$0xff] %v604
      $region40: #{gcn_forward.5} parent=31 // pred_fallthru
        _
      // Predicated region
      $region41: #{gcn_forward.5} parent=31 // pred_check
        %p621 = pneg %p549
      $region42: #{gcn_forward.5} parent=31 // pred_check_branch
        %623 = sbr.rel (%p621) target = $region44
      $region43: #{gcn_forward.5} parent=31 // pred_region
        %v624 = vld [vmem:[#allocation2] sm:$0xff]
        %v625 = vld [vmem:[#allocation2 + $0x8] sm:$0xff]
        %v626 = vld [vmem:[#allocation2 + $0x10] sm:$0xff]
        %v627 = vld [vmem:[#allocation2 + $0x18] sm:$0xff]
        %v628 = vld [vmem:[#allocation2 + $0x20] sm:$0xff]
        %v629 = vld [vmem:[#allocation2 + $0x28] sm:$0xff]
        %v630 = vld [vmem:[#allocation2 + $0x30] sm:$0xff]
        %v631 = vld [vmem:[#allocation2 + $0x38] sm:$0xff]
        %v632 = vld [vmem:[#allocation2 + $0x40] sm:$0xff]
        %v633 = vld [vmem:[#allocation2 + $0x48] sm:$0xff]
        %v634 = vld [vmem:[#allocation2 + $0x50] sm:$0xff]
        %v635 = vld [vmem:[#allocation2 + $0x58] sm:$0xff]
        %v636 = vld [vmem:[#allocation2 + $0x60] sm:$0xff]
        %v637 = vld [vmem:[#allocation2 + $0x68] sm:$0xff]
        %v638 = vld [vmem:[#allocation2 + $0x70] sm:$0xff]
        %v639 = vld [vmem:[#allocation2 + $0x78] sm:$0xff]
        %v640 = vld [vmem:[%s2] sm:$0x1]
        %v642 = vlaneseq
        %v643 = vshrl.u32 %v642, 7
        %v644 = vsub.s32 0, %v643
        %v645 = vrot.slane %v640, %v644
        %v647 = vadd.f32 %v624, %v645
        %v648 = vadd.f32 %v625, %v645
        %v649 = vadd.f32 %v626, %v645
        %v650 = vadd.f32 %v627, %v645
        %v651 = vadd.f32 %v628, %v645
        %v652 = vadd.f32 %v629, %v645
        %v653 = vadd.f32 %v630, %v645
        %v654 = vadd.f32 %v631, %v645
        %v655 = vadd.f32 %v632, %v645
        %v656 = vadd.f32 %v633, %v645
        %v657 = vadd.f32 %v634, %v645
        %v658 = vadd.f32 %v635, %v645
        %v659 = vadd.f32 %v636, %v645
        %v660 = vadd.f32 %v637, %v645
        %v661 = vadd.f32 %v638, %v645
        %v662 = vadd.f32 %v639, %v645
        %663 = vst [vmem:[%s225] sm:$0xff] %v647
        %664 = vst [vmem:[%s225 + $0x8] sm:$0xff] %v648
        %665 = vst [vmem:[%s225 + $0x10] sm:$0xff] %v649
        %666 = vst [vmem:[%s225 + $0x18] sm:$0xff] %v650
        %667 = vst [vmem:[%s225 + $0x20] sm:$0xff] %v651
        %668 = vst [vmem:[%s225 + $0x28] sm:$0xff] %v652
        %669 = vst [vmem:[%s225 + $0x30] sm:$0xff] %v653
        %670 = vst [vmem:[%s225 + $0x38] sm:$0xff] %v654
        %671 = vst [vmem:[%s225 + $0x40] sm:$0xff] %v655
        %672 = vst [vmem:[%s225 + $0x48] sm:$0xff] %v656
        %673 = vst [vmem:[%s225 + $0x50] sm:$0xff] %v657
        %674 = vst [vmem:[%s225 + $0x58] sm:$0xff] %v658
        %675 = vst [vmem:[%s225 + $0x60] sm:$0xff] %v659
        %676 = vst [vmem:[%s225 + $0x68] sm:$0xff] %v660
        %677 = vst [vmem:[%s225 + $0x70] sm:$0xff] %v661
        %678 = vst [vmem:[%s225 + $0x78] sm:$0xff] %v662
      $region44: #{gcn_forward.5} parent=31 // pred_fallthru
        _
      %s679 = smul.u32 16, %s18
      %p680 = scmp.lt.s32.totalorder %s679, 31
      %s681 = scalar_select %p680, %s679, 31
      %s682 = smul.addr %s681, 8
      %s683 = scalar_lea.vmem %s3, %s682
      // Predicated region
      $region45: #{gcn_forward.5} parent=31 // pred_check
        %p684 = pneg %p119
      $region46: #{gcn_forward.5} parent=31 // pred_check_branch
        %686 = sbr.rel (%p684) target = $region48
      $region47: #{gcn_forward.5} parent=31 // pred_region
        %s687 = smul.u32 16, %s18
      $region48: #{gcn_forward.5} parent=31 // pred_fallthru
        _
    $region32: #{gcn_forward.5} parent=5 // pred_fallthru
      _
    %p688 = scmp.le.s32.totalorder 2, %s9
    // Predicated region
    $region49: #{gcn_forward.5} parent=5 // pred_check
      %p689 = pneg %p688
    $region50: #{gcn_forward.5} parent=5 // pred_check_branch
      %691 = sbr.rel (%p689) target = $region52
    $region51: #{gcn_forward.5} parent=5 // pred_region
      %s692 = ssub.s32 %s9, 2
      // Predicated region
      $region53: #{gcn_forward.5} parent=51 // pred_check
        %p693 = pneg %p125
      $region54: #{gcn_forward.5} parent=51 // pred_check_branch
        %695 = sbr.rel (%p693) target = $region56
      $region55: #{gcn_forward.5} parent=51 // pred_region
        %s696 = smul.u32 16, %s20
        %p697 = scmp.lt.s32.totalorder %s696, 31
        %s698 = scalar_select %p697, %s696, 31
        %s699 = smul.addr %s698, 8
        %s700 = scalar_lea.vmem %s3, %s699
      $region56: #{gcn_forward.5} parent=51 // pred_fallthru
        _
    $region52: #{gcn_forward.5} parent=5 // pred_fallthru
      _
  $region6: #{gcn_forward.5} parent=0 // loop_footer
    %s13 = sadd.s32 1, %s9
  $region7: #{gcn_forward.5} parent=0 // loop_footer_branch
    %8 = sbr.rel target = $region3
  $region8: #{gcn_forward.5} parent=0 // loop_exit
    _

// kernel: gcn_forward.4
$region0: #{gcn_forward.4}
  #allocation0 [shape = 'u32[]', space=smem, size = 0x4, offset = 0x4, fixed_abs, tag = 'smem constant byte address 0x4 - core index']
  #allocation1 [shape = 'u32[144,128]{1,0:T(1,128)}', space=vmem, size = 0x12000, scoped, tag = 'internal scratch']
  #allocation2 [shape = 'f32[128,128]{1,0:T(8,128)}', space=vmem, size = 0x10000, scoped, tag = 'scratch operand']
  %s0 = inlined_call_operand.vmem [shape: bf16[256,256], index: 0, kind: input, shape index: {}]
  %s1 = inlined_call_operand.vmem [shape: bf16[256,128], index: 1, kind: input, shape index: {}]
  %s2 = inlined_call_operand.vmem [shape: f32[1,128], index: 2, kind: input, shape index: {}]
  %s3 = inlined_call_operand.vmem [shape: bf16[128,128], index: 3, kind: input, shape index: {}]
  %s4 = inlined_call_operand.vmem [shape: bf16[256,128], index: 4, kind: output, shape index: {}]
  %s5 = sld [smem:[#allocation0]]
  $region61: #{gcn_forward.4} parent=0
    _
  %s7 = ssub.s32 1, %s5
  %s8 = scalar_select 0, %s7, %s5
  loop: start=0, step=1, limit=4
  $region2: #{gcn_forward.4} parent=0 // loop_pre_header
    _
  $region3: #{gcn_forward.4} parent=0 // loop_header
    %s10 = sphi 0, %s14
    %p11 = scmp.ge.s32.totalorder %s10, 4
    %s17 = sphi 0, %s29
    %s18 = sphi 0, %s25
    %s19 = sphi 0, %s17
    %s20 = sphi 0, %s18
    %s21 = sphi 0, %s19
    %s22 = sphi 0, %s20
    %s34 = sphi 0, %s36
    %s37 = sphi 0, %s34
    %s38 = sphi 0, %s37
    %s54 = sphi 0, %s38
    %s60 = sphi 0, %s62
    %s63 = sphi 0, %s60
    %s64 = sphi 0, %s63
    %s80 = sphi 0, %s64
    %s84 = sphi 0, %s84
    %s86 = sphi 0, %s84
    %s87 = sphi 0, %s86
    %s101 = sphi 0, %s87
    %s105 = sphi 0, %s105
    %s107 = sphi 0, %s105
    %s108 = sphi 0, %s107
    %s122 = sphi 0, %s108
    %s128 = sphi 0, %s130
    %s131 = sphi 0, %s128
    %s132 = sphi 0, %s131
    %s148 = sphi 0, %s132
  $region4: #{gcn_forward.4} parent=0 // loop_header_branch
    %13 = sbr.rel (%p11) target = $region8
  $region5: #{gcn_forward.4} parent=0 // loop_body
    %s15 = ssub.s32 %s10, 1
    %s16 = ssub.s32 %s10, 2
    %s23 = sadd.s32 1, %s18
    %p24 = scmp.ge.s32.totalorder %s23, 1
    %s25 = scalar_select %p24, 0, %s23
    %s26 = sadd.s32 1, %s17
    %s27 = scalar_select %p24, %s26, %s17
    %p28 = scmp.ge.s32.totalorder %s27, 2
    %s29 = scalar_select %p28, 0, %s27
    %s30 = ssub.s32 %s17, %s29
    %s31 = ssub.s32 %s18, %s25
    %s32 = sor.u32 %s30, %s31
    %p33 = scmp.eq.s32.totalorder %s32, 0
    %s35 = sadd.s32 %s34, 1
    %s36 = scalar_select %p33, %s34, %s35
    %p39 = pneg %p33
    %p40 = scmp.eq.s32.totalorder %s10, 1
    %p41 = por %p39, %p40
    %p42 = scmp.ne.s32.totalorder %s34, %s37
    %p43 = scmp.eq.s32.totalorder %s10, 0
    %p44 = por %p42, %p43
    %p45 = scmp.ne.s32.totalorder %s34, %s37
    %p46 = scmp.eq.s32.totalorder %s15, 1
    %p47 = por %p45, %p46
    %p48 = scmp.ne.s32.totalorder %s37, %s38
    %p49 = scmp.eq.s32.totalorder %s15, 0
    %p50 = por %p48, %p49
    %p51 = scmp.ne.s32.totalorder %s37, %s38
    %p52 = scmp.eq.s32.totalorder %s16, 1
    %p53 = por %p51, %p52
    %p55 = scmp.ne.s32.totalorder %s38, %s54
    %p56 = scmp.eq.s32.totalorder %s16, 0
    %p57 = por %p55, %p56
    %s58 = ssub.s32 %s18, %s25
    %p59 = scmp.eq.s32.totalorder %s58, 0
    %s61 = sadd.s32 %s60, 1
    %s62 = scalar_select %p59, %s60, %s61
    %p65 = pneg %p59
    %p66 = scmp.eq.s32.totalorder %s10, 1
    %p67 = por %p65, %p66
    %p68 = scmp.ne.s32.totalorder %s60, %s63
    %p69 = scmp.eq.s32.totalorder %s10, 0
    %p70 = por %p68, %p69
    %p71 = scmp.ne.s32.totalorder %s60, %s63
    %p72 = scmp.eq.s32.totalorder %s15, 1
    %p73 = por %p71, %p72
    %p74 = scmp.ne.s32.totalorder %s63, %s64
    %p75 = scmp.eq.s32.totalorder %s15, 0
    %p76 = por %p74, %p75
    %p77 = scmp.ne.s32.totalorder %s63, %s64
    %p78 = scmp.eq.s32.totalorder %s16, 1
    %p79 = por %p77, %p78
    %p81 = scmp.ne.s32.totalorder %s64, %s80
    %p82 = scmp.eq.s32.totalorder %s16, 0
    %p83 = por %p81, %p82
    %s85 = sadd.s32 %s84, 1
    %p88 = scmp.eq.s32.totalorder %s10, 1
    %p89 = scmp.ne.s32.totalorder %s84, %s86
    %p90 = scmp.eq.s32.totalorder %s10, 0
    %p91 = por %p89, %p90
    %p92 = scmp.ne.s32.totalorder %s84, %s86
    %p93 = scmp.eq.s32.totalorder %s15, 1
    %p94 = por %p92, %p93
    %p95 = scmp.ne.s32.totalorder %s86, %s87
    %p96 = scmp.eq.s32.totalorder %s15, 0
    %p97 = por %p95, %p96
    %p98 = scmp.ne.s32.totalorder %s86, %s87
    %p99 = scmp.eq.s32.totalorder %s16, 1
    %p100 = por %p98, %p99
    %p102 = scmp.ne.s32.totalorder %s87, %s101
    %p103 = scmp.eq.s32.totalorder %s16, 0
    %p104 = por %p102, %p103
    %s106 = sadd.s32 %s105, 1
    %p109 = scmp.eq.s32.totalorder %s10, 1
    %p110 = scmp.ne.s32.totalorder %s105, %s107
    %p111 = scmp.eq.s32.totalorder %s10, 0
    %p112 = por %p110, %p111
    %p113 = scmp.ne.s32.totalorder %s105, %s107
    %p114 = scmp.eq.s32.totalorder %s15, 1
    %p115 = por %p113, %p114
    %p116 = scmp.ne.s32.totalorder %s107, %s108
    %p117 = scmp.eq.s32.totalorder %s15, 0
    %p118 = por %p116, %p117
    %p119 = scmp.ne.s32.totalorder %s107, %s108
    %p120 = scmp.eq.s32.totalorder %s16, 1
    %p121 = por %p119, %p120
    %p123 = scmp.ne.s32.totalorder %s108, %s122
    %p124 = scmp.eq.s32.totalorder %s16, 0
    %p125 = por %p123, %p124
    %s126 = ssub.s32 %s17, %s29
    %p127 = scmp.eq.s32.totalorder %s126, 0
    %s129 = sadd.s32 %s128, 1
    %s130 = scalar_select %p127, %s128, %s129
    %p133 = pneg %p127
    %p134 = scmp.eq.s32.totalorder %s10, 1
    %p135 = por %p133, %p134
    %p136 = scmp.ne.s32.totalorder %s128, %s131
    %p137 = scmp.eq.s32.totalorder %s10, 0
    %p138 = por %p136, %p137
    %p139 = scmp.ne.s32.totalorder %s128, %s131
    %p140 = scmp.eq.s32.totalorder %s15, 1
    %p141 = por %p139, %p140
    %p142 = scmp.ne.s32.totalorder %s131, %s132
    %p143 = scmp.eq.s32.totalorder %s15, 0
    %p144 = por %p142, %p143
    %p145 = scmp.ne.s32.totalorder %s131, %s132
    %p146 = scmp.eq.s32.totalorder %s16, 1
    %p147 = por %p145, %p146
    %p149 = scmp.ne.s32.totalorder %s132, %s148
    %p150 = scmp.eq.s32.totalorder %s16, 0
    %p151 = por %p149, %p150
    %p152 = scmp.le.s32.totalorder 1, %s10
    %p153 = scmp.lt.s32.totalorder %s10, 3
    %p154 = pnand %p152, %p153
    %p155 = pneg %p154
    // Predicated region
    $region9: #{gcn_forward.4} parent=5 // pred_check
      _
    $region10: #{gcn_forward.4} parent=5 // pred_check_branch
      %157 = sbr.rel (%p154) target = $region12
    $region11: #{gcn_forward.4} parent=5 // pred_region
      %s158 = ssub.s32 %s10, 1
      // Predicated region
      $region13: #{gcn_forward.4} parent=11 // pred_check
        %p159 = pneg %p76
      $region14: #{gcn_forward.4} parent=11 // pred_check_branch
        %161 = sbr.rel (%p159) target = $region16
      $region15: #{gcn_forward.4} parent=11 // pred_region
        %s162 = smul.u32 32, %s20
        %p163 = scmp.lt.s32.totalorder %s162, 31
        %s164 = scalar_select %p163, %s162, 31
        %s165 = smul.addr %s164, 4
        %s166 = scalar_lea.vmem %s1, %s165
        %s167 = smul.u32 32, %s20
      $region16: #{gcn_forward.4} parent=11 // pred_fallthru
        _
      // Predicated region
      $region17: #{gcn_forward.4} parent=11 // pred_check
        %p168 = pneg %p97
      $region18: #{gcn_forward.4} parent=11 // pred_check_branch
        %170 = sbr.rel (%p168) target = $region20
      $region19: #{gcn_forward.4} parent=11 // pred_region
        _
      $region20: #{gcn_forward.4} parent=11 // pred_fallthru
        _
      // Predicated region
      $region21: #{gcn_forward.4} parent=11 // pred_check
        %p171 = pneg %p118
      $region22: #{gcn_forward.4} parent=11 // pred_check_branch
        %173 = sbr.rel (%p171) target = $region24
      $region23: #{gcn_forward.4} parent=11 // pred_region
        _
      $region24: #{gcn_forward.4} parent=11 // pred_fallthru
        _
    $region12: #{gcn_forward.4} parent=5 // pred_fallthru
      _
    %p174 = scmp.lt.s32.totalorder %s10, 2
    // Predicated region
    $region25: #{gcn_forward.4} parent=5 // pred_check
      %p175 = pneg %p174
    $region26: #{gcn_forward.4} parent=5 // pred_check_branch
      %177 = sbr.rel (%p175) target = $region28
    $region27: #{gcn_forward.4} parent=5 // pred_region
      // Predicated region
      $region29: #{gcn_forward.4} parent=27 // pred_check
        %p178 = pneg %p44
      $region30: #{gcn_forward.4} parent=27 // pred_check_branch
        %180 = sbr.rel (%p178) target = $region32
      $region31: #{gcn_forward.4} parent=27 // pred_region
        %s181 = smul.u32 16, %s17
        %s182 = smul.u32 2, %s18
        %p183 = scmp.lt.s32.totalorder %s181, 31
        %s184 = scalar_select %p183, %s181, 31
        %p185 = scmp.lt.s32.totalorder %s182, 1
        %s186 = scalar_select %p185, %s182, 1
        %s187 = smul.addr %s184, 2
        %s188 = sadd.s32 %s186, %s187
        %s189 = smul.addr %s188, 4
        %s190 = scalar_lea.vmem %s0, %s189
        %s191 = smul.u32 16, %s17
        %s192 = smul.u32 2, %s18
      $region32: #{gcn_forward.4} parent=27 // pred_fallthru
        _
    $region28: #{gcn_forward.4} parent=5 // pred_fallthru
      _
    %p193 = scmp.le.s32.totalorder 1, %s10
    %p194 = scmp.lt.s32.totalorder %s10, 3
    %p195 = pnand %p193, %p194
    %p196 = pneg %p195
    // Predicated region
    $region33: #{gcn_forward.4} parent=5 // pred_check
      _
    $region34: #{gcn_forward.4} parent=5 // pred_check_branch
      %198 = sbr.rel (%p195) target = $region36
    $region35: #{gcn_forward.4} parent=5 // pred_region
      %s199 = ssub.s32 %s10, 1
      %s200 = smul.u32 16, %s19
      %s201 = smul.u32 2, %s20
      %p202 = scmp.lt.s32.totalorder %s200, 31
      %s203 = scalar_select %p202, %s200, 31
      %p204 = scmp.lt.s32.totalorder %s201, 1
      %s205 = scalar_select %p204, %s201, 1
      %s206 = smul.addr %s203, 2
      %s207 = sadd.s32 %s205, %s206
      %s208 = smul.addr %s207, 4
      %s209 = scalar_lea.vmem %s0, %s208
      %p210 = pneg %p50
      %p211 = pneg %p47
      %s212 = smul.u32 32, %s20
      %p213 = scmp.lt.s32.totalorder %s212, 31
      %s214 = scalar_select %p213, %s212, 31
      %s215 = smul.addr %s214, 4
      %s216 = scalar_lea.vmem %s1, %s215
      %p217 = pneg %p76
      %p218 = pneg %p73
      %p219 = pneg %p97
      %p220 = pneg %p94
      %p221 = pneg %p118
      %p222 = pneg %p115
      %p223 = pneg %p144
      %p224 = pneg %p141
      %s225 = smul.u32 16, %s19
      %p226 = scmp.lt.s32.totalorder %s225, 31
      %s227 = scalar_select %p226, %s225, 31
      %s228 = smul.addr %s227, 4
      %s229 = scalar_lea.vmem %s4, %s228
      %s230 = smul.u32 16, %s19
      %s231 = smul.u32 2, %s20
      %p232 = scmp.lt.s32.totalorder %s230, 31
      %s233 = scalar_select %p232, %s230, 31
      %p234 = scmp.lt.s32.totalorder %s231, 1
      %s235 = scalar_select %p234, %s231, 1
      %s236 = smul.addr %s233, 2
      %s237 = sadd.s32 %s235, %s236
      %s238 = smul.addr %s237, 4
      %s239 = scalar_lea.vmem %s0, %s238
      %s240 = smul.u32 16, %s19
      %s241 = smul.u32 2, %s20
      %s242 = smul.u32 32, %s20
      %p243 = scmp.lt.s32.totalorder %s242, 31
      %s244 = scalar_select %p243, %s242, 31
      %s245 = smul.addr %s244, 4
      %s246 = scalar_lea.vmem %s1, %s245
      %s247 = smul.u32 32, %s20
      %s248 = smul.u32 16, %s19
      %p249 = scmp.lt.s32.totalorder %s248, 31
      %s250 = scalar_select %p249, %s248, 31
      %s251 = smul.addr %s250, 4
      %s252 = scalar_lea.vmem %s4, %s251
      %s253 = smul.u32 16, %s19
      %v255 = vld [vmem:[%s239] sm:$0xff]
      %v256 = vld [vmem:[%s239 + $0x8] sm:$0xff]
      %v257 = vld [vmem:[%s239 + $0x10] sm:$0xff]
      %v258 = vld [vmem:[%s239 + $0x18] sm:$0xff]
      %v259 = vld [vmem:[%s239 + $0x20] sm:$0xff]
      %v260 = vld [vmem:[%s239 + $0x28] sm:$0xff]
      %v261 = vld [vmem:[%s239 + $0x30] sm:$0xff]
      %v262 = vld [vmem:[%s239 + $0x38] sm:$0xff]
      %v263 = vld [vmem:[%s239 + $0x40] sm:$0xff]
      %v264 = vld [vmem:[%s239 + $0x48] sm:$0xff]
      %v265 = vld [vmem:[%s239 + $0x50] sm:$0xff]
      %v266 = vld [vmem:[%s239 + $0x58] sm:$0xff]
      %v267 = vld [vmem:[%s239 + $0x60] sm:$0xff]
      %v268 = vld [vmem:[%s239 + $0x68] sm:$0xff]
      %v269 = vld [vmem:[%s239 + $0x70] sm:$0xff]
      %v270 = vld [vmem:[%s239 + $0x78] sm:$0xff]
      %v271 = vld [vmem:[%s246] sm:$0xf]
      %v272 = vld [vmem:[%s246 + $0x4] sm:$0xf]
      %v273 = vld [vmem:[%s246 + $0x8] sm:$0xf]
      %v274 = vld [vmem:[%s246 + $0xc] sm:$0xf]
      %v275 = vld [vmem:[%s246 + $0x10] sm:$0xf]
      %v276 = vld [vmem:[%s246 + $0x14] sm:$0xf]
      %v277 = vld [vmem:[%s246 + $0x18] sm:$0xf]
      %v278 = vld [vmem:[%s246 + $0x1c] sm:$0xf]
      %v279 = vld [vmem:[%s246 + $0x20] sm:$0xf]
      %v280 = vld [vmem:[%s246 + $0x24] sm:$0xf]
      %v281 = vld [vmem:[%s246 + $0x28] sm:$0xf]
      %v282 = vld [vmem:[%s246 + $0x2c] sm:$0xf]
      %v283 = vld [vmem:[%s246 + $0x30] sm:$0xf]
      %v284 = vld [vmem:[%s246 + $0x34] sm:$0xf]
      %v285 = vld [vmem:[%s246 + $0x38] sm:$0xf]
      %v286 = vld [vmem:[%s246 + $0x3c] sm:$0xf]
      %v287 = vld [vmem:[%s246 + $0x40] sm:$0xf]
      %v288 = vld [vmem:[%s246 + $0x44] sm:$0xf]
      %v289 = vld [vmem:[%s246 + $0x48] sm:$0xf]
      %v290 = vld [vmem:[%s246 + $0x4c] sm:$0xf]
      %v291 = vld [vmem:[%s246 + $0x50] sm:$0xf]
      %v292 = vld [vmem:[%s246 + $0x54] sm:$0xf]
      %v293 = vld [vmem:[%s246 + $0x58] sm:$0xf]
      %v294 = vld [vmem:[%s246 + $0x5c] sm:$0xf]
      %v295 = vld [vmem:[%s246 + $0x60] sm:$0xf]
      %v296 = vld [vmem:[%s246 + $0x64] sm:$0xf]
      %v297 = vld [vmem:[%s246 + $0x68] sm:$0xf]
      %v298 = vld [vmem:[%s246 + $0x6c] sm:$0xf]
      %v299 = vld [vmem:[%s246 + $0x70] sm:$0xf]
      %v300 = vld [vmem:[%s246 + $0x74] sm:$0xf]
      %v301 = vld [vmem:[%s246 + $0x78] sm:$0xf]
      %v302 = vld [vmem:[%s246 + $0x7c] sm:$0xf]
      %v319 = vunpack.c.l.b16 %v255
      %v320 = vunpack.c.h.b16 %v255
      %v321 = vunpack.c.l.b16 %v256
      %v322 = vunpack.c.h.b16 %v256
      %v323 = vunpack.c.l.b16 %v257
      %v324 = vunpack.c.h.b16 %v257
      %v325 = vunpack.c.l.b16 %v258
      %v326 = vunpack.c.h.b16 %v258
      %v327 = vunpack.c.l.b16 %v259
      %v328 = vunpack.c.h.b16 %v259
      %v329 = vunpack.c.l.b16 %v260
      %v330 = vunpack.c.h.b16 %v260
      %v331 = vunpack.c.l.b16 %v261
      %v332 = vunpack.c.h.b16 %v261
      %v333 = vunpack.c.l.b16 %v262
      %v334 = vunpack.c.h.b16 %v262
      %v335 = vunpack.c.l.b16 %v263
      %v336 = vunpack.c.h.b16 %v263
      %v337 = vunpack.c.l.b16 %v264
      %v338 = vunpack.c.h.b16 %v264
      %v339 = vunpack.c.l.b16 %v265
      %v340 = vunpack.c.h.b16 %v265
      %v341 = vunpack.c.l.b16 %v266
      %v342 = vunpack.c.h.b16 %v266
      %v343 = vunpack.c.l.b16 %v267
      %v344 = vunpack.c.h.b16 %v267
      %v345 = vunpack.c.l.b16 %v268
      %v346 = vunpack.c.h.b16 %v268
      %v347 = vunpack.c.l.b16 %v269
      %v348 = vunpack.c.h.b16 %v269
      %v349 = vunpack.c.l.b16 %v270
      %v350 = vunpack.c.h.b16 %v270
      %v351 = vpack.c.b16 %v321, %v319
      %v352 = vpack.c.b16 %v322, %v320
      %v353 = vpack.c.b16 %v325, %v323
      %v354 = vpack.c.b16 %v326, %v324
      %v355 = vpack.c.b16 %v329, %v327
      %v356 = vpack.c.b16 %v330, %v328
      %v357 = vpack.c.b16 %v333, %v331
      %v358 = vpack.c.b16 %v334, %v332
      %v359 = vpack.c.b16 %v337, %v335
      %v360 = vpack.c.b16 %v338, %v336
      %v361 = vpack.c.b16 %v341, %v339
      %v362 = vpack.c.b16 %v342, %v340
      %v363 = vpack.c.b16 %v345, %v343
      %v364 = vpack.c.b16 %v346, %v344
      %v365 = vpack.c.b16 %v349, %v347
      %v366 = vpack.c.b16 %v350, %v348
      %v415 = vunpack.c.l.b16 %v271
      %v416 = vunpack.c.l.b16 %v272
      %v417 = vunpack.c.l.b16 %v273
      %v418 = vunpack.c.l.b16 %v274
      %v419 = vunpack.c.l.b16 %v275
      %v420 = vunpack.c.l.b16 %v276
      %v421 = vunpack.c.l.b16 %v277
      %v422 = vunpack.c.l.b16 %v278
      %v423 = vunpack.c.l.b16 %v279
      %v424 = vunpack.c.l.b16 %v280
      %v425 = vunpack.c.l.b16 %v281
      %v426 = vunpack.c.l.b16 %v282
      %v427 = vunpack.c.l.b16 %v283
      %v428 = vunpack.c.l.b16 %v284
      %v429 = vunpack.c.l.b16 %v285
      %v430 = vunpack.c.l.b16 %v286
      %v431 = vunpack.c.l.b16 %v287
      %v432 = vunpack.c.l.b16 %v288
      %v433 = vunpack.c.l.b16 %v289
      %v434 = vunpack.c.l.b16 %v290
      %v435 = vunpack.c.l.b16 %v291
      %v436 = vunpack.c.l.b16 %v292
      %v437 = vunpack.c.l.b16 %v293
      %v438 = vunpack.c.l.b16 %v294
      %v439 = vunpack.c.l.b16 %v295
      %v440 = vunpack.c.l.b16 %v296
      %v441 = vunpack.c.l.b16 %v297
      %v442 = vunpack.c.l.b16 %v298
      %v443 = vunpack.c.l.b16 %v299
      %v444 = vunpack.c.l.b16 %v300
      %v445 = vunpack.c.l.b16 %v301
      %v446 = vunpack.c.l.b16 %v302
      %v447 = vpack.c.b16 %v416, %v415
      %v448 = vpack.c.b16 %v418, %v417
      %v449 = vpack.c.b16 %v420, %v419
      %v450 = vpack.c.b16 %v422, %v421
      %v451 = vpack.c.b16 %v424, %v423
      %v452 = vpack.c.b16 %v426, %v425
      %v453 = vpack.c.b16 %v428, %v427
      %v454 = vpack.c.b16 %v430, %v429
      %v455 = vpack.c.b16 %v432, %v431
      %v456 = vpack.c.b16 %v434, %v433
      %v457 = vpack.c.b16 %v436, %v435
      %v458 = vpack.c.b16 %v438, %v437
      %v459 = vpack.c.b16 %v440, %v439
      %v460 = vpack.c.b16 %v442, %v441
      %v461 = vpack.c.b16 %v444, %v443
      %v462 = vpack.c.b16 %v446, %v445
      %479 = vmatprep.subr.bf16.mxu0 0
      %480 = vmatpush1.bf16.msra.mxu0 %v447
      %481 = vmatprep.subr.bf16.mxu0 0
      %482 = vmatpush1.bf16.msra.mxu0 %v448
      %483 = vmatprep.subr.bf16.mxu0 0
      %484 = vmatpush1.bf16.msra.mxu0 %v449
      %485 = vmatprep.subr.bf16.mxu0 0
      %486 = vmatpush1.bf16.msra.mxu0 %v450
      %487 = vmatprep.subr.bf16.mxu0 0
      %488 = vmatpush1.bf16.msra.mxu0 %v451
      %489 = vmatprep.subr.bf16.mxu0 0
      %490 = vmatpush1.bf16.msra.mxu0 %v452
      %491 = vmatprep.subr.bf16.mxu0 0
      %492 = vmatpush1.bf16.msra.mxu0 %v453
      %493 = vmatprep.subr.bf16.mxu0 0
      %494 = vmatpush1.bf16.msra.mxu0 %v454
      %495 = vmatprep.subr.bf16.mxu0 0
      %496 = vmatpush1.bf16.msra.mxu0 %v455
      %497 = vmatprep.subr.bf16.mxu0 0
      %498 = vmatpush1.bf16.msra.mxu0 %v456
      %499 = vmatprep.subr.bf16.mxu0 0
      %500 = vmatpush1.bf16.msra.mxu0 %v457
      %501 = vmatprep.subr.bf16.mxu0 0
      %502 = vmatpush1.bf16.msra.mxu0 %v458
      %503 = vmatprep.subr.bf16.mxu0 0
      %504 = vmatpush1.bf16.msra.mxu0 %v459
      %505 = vmatprep.subr.bf16.mxu0 0
      %506 = vmatpush1.bf16.msra.mxu0 %v460
      %507 = vmatprep.subr.bf16.mxu0 0
      %508 = vmatpush1.bf16.msra.mxu0 %v461
      %509 = vmatprep.subr.bf16.mxu0 0
      %510 = vmatpush1.bf16.msra.mxu0 %v462
      %511 = vmatprep.mubr.bf16.mxu0 %v352
      %512 = vmatmul.mubr.bf16.gmra.mrb[0].mxu0 %v351
      %v513 = vpop.f32.mrb[0].mxu0
      %v514 = vadd.f32 0.0, %v513
      %v515 = vpop.f32.mrb[0].mxu0
      %v516 = vpop.f32.mrb[0].mxu0
      %v517 = vadd.f32 0.0, %v516
      %v518 = vpop.f32.mrb[0].mxu0
      %519 = vmatprep.mubr.bf16.mxu0 %v354
      %520 = vmatmul.mubr.bf16.gmra.mrb[0].mxu0 %v353
      %v521 = vpop.f32.mrb[0].mxu0
      %v522 = vadd.f32 0.0, %v521
      %v523 = vpop.f32.mrb[0].mxu0
      %v524 = vpop.f32.mrb[0].mxu0
      %v525 = vadd.f32 0.0, %v524
      %v526 = vpop.f32.mrb[0].mxu0
      %527 = vmatprep.mubr.bf16.mxu0 %v356
      %528 = vmatmul.mubr.bf16.gmra.mrb[0].mxu0 %v355
      %v529 = vpop.f32.mrb[0].mxu0
      %v530 = vadd.f32 0.0, %v529
      %v531 = vpop.f32.mrb[0].mxu0
      %v532 = vpop.f32.mrb[0].mxu0
      %v533 = vadd.f32 0.0, %v532
      %v534 = vpop.f32.mrb[0].mxu0
      %535 = vmatprep.mubr.bf16.mxu0 %v358
      %536 = vmatmul.mubr.bf16.gmra.mrb[0].mxu0 %v357
      %v537 = vpop.f32.mrb[0].mxu0
      %v538 = vadd.f32 0.0, %v537
      %v539 = vpop.f32.mrb[0].mxu0
      %v540 = vpop.f32.mrb[0].mxu0
      %v541 = vadd.f32 0.0, %v540
      %v542 = vpop.f32.mrb[0].mxu0
      %543 = vmatprep.mubr.bf16.mxu0 %v360
      %544 = vmatmul.mubr.bf16.gmra.mrb[0].mxu0 %v359
      %v545 = vpop.f32.mrb[0].mxu0
      %v546 = vadd.f32 0.0, %v545
      %v547 = vpop.f32.mrb[0].mxu0
      %v548 = vpop.f32.mrb[0].mxu0
      %v549 = vadd.f32 0.0, %v548
      %v550 = vpop.f32.mrb[0].mxu0
      %551 = vmatprep.mubr.bf16.mxu0 %v362
      %552 = vmatmul.mubr.bf16.gmra.mrb[0].mxu0 %v361
      %v553 = vpop.f32.mrb[0].mxu0
      %v554 = vadd.f32 0.0, %v553
      %v555 = vpop.f32.mrb[0].mxu0
      %v556 = vpop.f32.mrb[0].mxu0
      %v557 = vadd.f32 0.0, %v556
      %v558 = vpop.f32.mrb[0].mxu0
      %559 = vmatprep.mubr.bf16.mxu0 %v364
      %560 = vmatmul.mubr.bf16.gmra.mrb[0].mxu0 %v363
      %v561 = vpop.f32.mrb[0].mxu0
      %v562 = vadd.f32 0.0, %v561
      %v563 = vpop.f32.mrb[0].mxu0
      %v564 = vpop.f32.mrb[0].mxu0
      %v565 = vadd.f32 0.0, %v564
      %v566 = vpop.f32.mrb[0].mxu0
      %567 = vmatprep.mubr.bf16.mxu0 %v366
      %568 = vmatmul.mubr.bf16.gmra.mrb[0].mxu0 %v365
      %v569 = vpop.f32.mrb[0].mxu0
      %v570 = vadd.f32 0.0, %v569
      %v571 = vpop.f32.mrb[0].mxu0
      %v572 = vpop.f32.mrb[0].mxu0
      %v573 = vadd.f32 0.0, %v572
      %v574 = vpop.f32.mrb[0].mxu0
      %575 = vdwg.mxu0
      %p576 = scmp.eq.s32.totalorder %s20, 0
      // Predicated region
      $region37: #{gcn_forward.4} parent=35 // pred_check
        %p577 = pneg %p576
      $region38: #{gcn_forward.4} parent=35 // pred_check_branch
        %579 = sbr.rel (%p577) target = $region40
      $region39: #{gcn_forward.4} parent=35 // pred_region
        %580 = vst [vmem:[#allocation2] sm:$0xff] %v514
        %581 = vst [vmem:[#allocation2 + $0x8] sm:$0xff] %v517
        %582 = vst [vmem:[#allocation2 + $0x10] sm:$0xff] %v522
        %583 = vst [vmem:[#allocation2 + $0x18] sm:$0xff] %v525
        %584 = vst [vmem:[#allocation2 + $0x20] sm:$0xff] %v530
        %585 = vst [vmem:[#allocation2 + $0x28] sm:$0xff] %v533
        %586 = vst [vmem:[#allocation2 + $0x30] sm:$0xff] %v538
        %587 = vst [vmem:[#allocation2 + $0x38] sm:$0xff] %v541
        %588 = vst [vmem:[#allocation2 + $0x40] sm:$0xff] %v546
        %589 = vst [vmem:[#allocation2 + $0x48] sm:$0xff] %v549
        %590 = vst [vmem:[#allocation2 + $0x50] sm:$0xff] %v554
        %591 = vst [vmem:[#allocation2 + $0x58] sm:$0xff] %v557
        %592 = vst [vmem:[#allocation2 + $0x60] sm:$0xff] %v562
        %593 = vst [vmem:[#allocation2 + $0x68] sm:$0xff] %v565
        %594 = vst [vmem:[#allocation2 + $0x70] sm:$0xff] %v570
        %595 = vst [vmem:[#allocation2 + $0x78] sm:$0xff] %v573
      $region40: #{gcn_forward.4} parent=35 // pred_fallthru
        _
      %p596 = scmp.ne.s32.totalorder %s20, 0
      // Predicated region
      $region41: #{gcn_forward.4} parent=35 // pred_check
        %p597 = pneg %p596
      $region42: #{gcn_forward.4} parent=35 // pred_check_branch
        %599 = sbr.rel (%p597) target = $region44
      $region43: #{gcn_forward.4} parent=35 // pred_region
        %v600 = vld [vmem:[#allocation2] sm:$0xff]
        %v601 = vld [vmem:[#allocation2 + $0x8] sm:$0xff]
        %v602 = vld [vmem:[#allocation2 + $0x10] sm:$0xff]
        %v603 = vld [vmem:[#allocation2 + $0x18] sm:$0xff]
        %v604 = vld [vmem:[#allocation2 + $0x20] sm:$0xff]
        %v605 = vld [vmem:[#allocation2 + $0x28] sm:$0xff]
        %v606 = vld [vmem:[#allocation2 + $0x30] sm:$0xff]
        %v607 = vld [vmem:[#allocation2 + $0x38] sm:$0xff]
        %v608 = vld [vmem:[#allocation2 + $0x40] sm:$0xff]
        %v609 = vld [vmem:[#allocation2 + $0x48] sm:$0xff]
        %v610 = vld [vmem:[#allocation2 + $0x50] sm:$0xff]
        %v611 = vld [vmem:[#allocation2 + $0x58] sm:$0xff]
        %v612 = vld [vmem:[#allocation2 + $0x60] sm:$0xff]
        %v613 = vld [vmem:[#allocation2 + $0x68] sm:$0xff]
        %v614 = vld [vmem:[#allocation2 + $0x70] sm:$0xff]
        %v615 = vld [vmem:[#allocation2 + $0x78] sm:$0xff]
        %v616 = vadd.f32 %v600, %v514
        %v617 = vadd.f32 %v601, %v517
        %v618 = vadd.f32 %v602, %v522
        %v619 = vadd.f32 %v603, %v525
        %v620 = vadd.f32 %v604, %v530
        %v621 = vadd.f32 %v605, %v533
        %v622 = vadd.f32 %v606, %v538
        %v623 = vadd.f32 %v607, %v541
        %v624 = vadd.f32 %v608, %v546
        %v625 = vadd.f32 %v609, %v549
        %v626 = vadd.f32 %v610, %v554
        %v627 = vadd.f32 %v611, %v557
        %v628 = vadd.f32 %v612, %v562
        %v629 = vadd.f32 %v613, %v565
        %v630 = vadd.f32 %v614, %v570
        %v631 = vadd.f32 %v615, %v573
        %632 = vst [vmem:[#allocation2] sm:$0xff] %v616
        %633 = vst [vmem:[#allocation2 + $0x8] sm:$0xff] %v617
        %634 = vst [vmem:[#allocation2 + $0x10] sm:$0xff] %v618
        %635 = vst [vmem:[#allocation2 + $0x18] sm:$0xff] %v619
        %636 = vst [vmem:[#allocation2 + $0x20] sm:$0xff] %v620
        %637 = vst [vmem:[#allocation2 + $0x28] sm:$0xff] %v621
        %638 = vst [vmem:[#allocation2 + $0x30] sm:$0xff] %v622
        %639 = vst [vmem:[#allocation2 + $0x38] sm:$0xff] %v623
        %640 = vst [vmem:[#allocation2 + $0x40] sm:$0xff] %v624
        %641 = vst [vmem:[#allocation2 + $0x48] sm:$0xff] %v625
        %642 = vst [vmem:[#allocation2 + $0x50] sm:$0xff] %v626
        %643 = vst [vmem:[#allocation2 + $0x58] sm:$0xff] %v627
        %644 = vst [vmem:[#allocation2 + $0x60] sm:$0xff] %v628
        %645 = vst [vmem:[#allocation2 + $0x68] sm:$0xff] %v629
        %646 = vst [vmem:[#allocation2 + $0x70] sm:$0xff] %v630
        %647 = vst [vmem:[#allocation2 + $0x78] sm:$0xff] %v631
      $region44: #{gcn_forward.4} parent=35 // pred_fallthru
        _
      // Predicated region
      $region45: #{gcn_forward.4} parent=35 // pred_check
        %p648 = pneg %p576
      $region46: #{gcn_forward.4} parent=35 // pred_check_branch
        %650 = sbr.rel (%p648) target = $region48
      $region47: #{gcn_forward.4} parent=35 // pred_region
        %v651 = vld [vmem:[#allocation2] sm:$0xff]
        %v652 = vld [vmem:[#allocation2 + $0x8] sm:$0xff]
        %v653 = vld [vmem:[#allocation2 + $0x10] sm:$0xff]
        %v654 = vld [vmem:[#allocation2 + $0x18] sm:$0xff]
        %v655 = vld [vmem:[#allocation2 + $0x20] sm:$0xff]
        %v656 = vld [vmem:[#allocation2 + $0x28] sm:$0xff]
        %v657 = vld [vmem:[#allocation2 + $0x30] sm:$0xff]
        %v658 = vld [vmem:[#allocation2 + $0x38] sm:$0xff]
        %v659 = vld [vmem:[#allocation2 + $0x40] sm:$0xff]
        %v660 = vld [vmem:[#allocation2 + $0x48] sm:$0xff]
        %v661 = vld [vmem:[#allocation2 + $0x50] sm:$0xff]
        %v662 = vld [vmem:[#allocation2 + $0x58] sm:$0xff]
        %v663 = vld [vmem:[#allocation2 + $0x60] sm:$0xff]
        %v664 = vld [vmem:[#allocation2 + $0x68] sm:$0xff]
        %v665 = vld [vmem:[#allocation2 + $0x70] sm:$0xff]
        %v666 = vld [vmem:[#allocation2 + $0x78] sm:$0xff]
        %v667 = vld [vmem:[%s2] sm:$0x1]
        %v669 = vlaneseq
        %v670 = vshrl.u32 %v669, 7
        %v671 = vsub.s32 0, %v670
        %v672 = vrot.slane %v667, %v671
        %v674 = vadd.f32 %v651, %v672
        %v675 = vadd.f32 %v652, %v672
        %v676 = vadd.f32 %v653, %v672
        %v677 = vadd.f32 %v654, %v672
        %v678 = vadd.f32 %v655, %v672
        %v679 = vadd.f32 %v656, %v672
        %v680 = vadd.f32 %v657, %v672
        %v681 = vadd.f32 %v658, %v672
        %v682 = vadd.f32 %v659, %v672
        %v683 = vadd.f32 %v660, %v672
        %v684 = vadd.f32 %v661, %v672
        %v685 = vadd.f32 %v662, %v672
        %v686 = vadd.f32 %v663, %v672
        %v687 = vadd.f32 %v664, %v672
        %v688 = vadd.f32 %v665, %v672
        %v689 = vadd.f32 %v666, %v672
        %v690 = vmax.f32 %v674, 0.0
        %v691 = vmax.f32 %v675, 0.0
        %v692 = vmax.f32 %v676, 0.0
        %v693 = vmax.f32 %v677, 0.0
        %v694 = vmax.f32 %v678, 0.0
        %v695 = vmax.f32 %v679, 0.0
        %v696 = vmax.f32 %v680, 0.0
        %v697 = vmax.f32 %v681, 0.0
        %v698 = vmax.f32 %v682, 0.0
        %v699 = vmax.f32 %v683, 0.0
        %v700 = vmax.f32 %v684, 0.0
        %v701 = vmax.f32 %v685, 0.0
        %v702 = vmax.f32 %v686, 0.0
        %v703 = vmax.f32 %v687, 0.0
        %v704 = vmax.f32 %v688, 0.0
        %v705 = vmax.f32 %v689, 0.0
        %v706 = vpack.c.bf16 %v691, %v690
        %v707 = vpack.c.bf16 %v693, %v692
        %v708 = vpack.c.bf16 %v695, %v694
        %v709 = vpack.c.bf16 %v697, %v696
        %v710 = vpack.c.bf16 %v699, %v698
        %v711 = vpack.c.bf16 %v701, %v700
        %v712 = vpack.c.bf16 %v703, %v702
        %v713 = vpack.c.bf16 %v705, %v704
        %v714 = vld [vmem:[%s3] sm:$0xf]
        %v715 = vld [vmem:[%s3 + $0x4] sm:$0xf]
        %v716 = vld [vmem:[%s3 + $0x8] sm:$0xf]
        %v717 = vld [vmem:[%s3 + $0xc] sm:$0xf]
        %v718 = vld [vmem:[%s3 + $0x10] sm:$0xf]
        %v719 = vld [vmem:[%s3 + $0x14] sm:$0xf]
        %v720 = vld [vmem:[%s3 + $0x18] sm:$0xf]
        %v721 = vld [vmem:[%s3 + $0x1c] sm:$0xf]
        %v722 = vld [vmem:[%s3 + $0x20] sm:$0xf]
        %v723 = vld [vmem:[%s3 + $0x24] sm:$0xf]
        %v724 = vld [vmem:[%s3 + $0x28] sm:$0xf]
        %v725 = vld [vmem:[%s3 + $0x2c] sm:$0xf]
        %v726 = vld [vmem:[%s3 + $0x30] sm:$0xf]
        %v727 = vld [vmem:[%s3 + $0x34] sm:$0xf]
        %v728 = vld [vmem:[%s3 + $0x38] sm:$0xf]
        %v729 = vld [vmem:[%s3 + $0x3c] sm:$0xf]
        %v746 = vunpack.c.l.b16 %v714
        %v747 = vunpack.c.l.b16 %v715
        %v748 = vunpack.c.l.b16 %v716
        %v749 = vunpack.c.l.b16 %v717
        %v750 = vunpack.c.l.b16 %v718
        %v751 = vunpack.c.l.b16 %v719
        %v752 = vunpack.c.l.b16 %v720
        %v753 = vunpack.c.l.b16 %v721
        %v754 = vunpack.c.l.b16 %v722
        %v755 = vunpack.c.l.b16 %v723
        %v756 = vunpack.c.l.b16 %v724
        %v757 = vunpack.c.l.b16 %v725
        %v758 = vunpack.c.l.b16 %v726
        %v759 = vunpack.c.l.b16 %v727
        %v760 = vunpack.c.l.b16 %v728
        %v761 = vunpack.c.l.b16 %v729
        %v762 = vpack.c.b16 %v747, %v746
        %v763 = vpack.c.b16 %v749, %v748
        %v764 = vpack.c.b16 %v751, %v750
        %v765 = vpack.c.b16 %v753, %v752
        %v766 = vpack.c.b16 %v755, %v754
        %v767 = vpack.c.b16 %v757, %v756
        %v768 = vpack.c.b16 %v759, %v758
        %v769 = vpack.c.b16 %v761, %v760
        %778 = vmatprep.subr.bf16.mxu0 0
        %779 = vmatpush1.bf16.msra.mxu0 %v762
        %780 = vmatprep.subr.bf16.mxu0 0
        %781 = vmatpush1.bf16.msra.mxu0 %v763
        %782 = vmatprep.subr.bf16.mxu0 0
        %783 = vmatpush1.bf16.msra.mxu0 %v764
        %784 = vmatprep.subr.bf16.mxu0 0
        %785 = vmatpush1.bf16.msra.mxu0 %v765
        %786 = vmatprep.subr.bf16.mxu0 0
        %787 = vmatpush1.bf16.msra.mxu0 %v766
        %788 = vmatprep.subr.bf16.mxu0 0
        %789 = vmatpush1.bf16.msra.mxu0 %v767
        %790 = vmatprep.subr.bf16.mxu0 0
        %791 = vmatpush1.bf16.msra.mxu0 %v768
        %792 = vmatprep.subr.bf16.mxu0 0
        %793 = vmatpush1.bf16.msra.mxu0 %v769
        %794 = vmatprep.subr.bf16.mxu0 0
        %795 = vmatpush1.bf16.msra.mxu0 0
        %796 = vmatprep.subr.bf16.mxu0 0
        %797 = vmatpush1.bf16.msra.mxu0 0
        %798 = vmatprep.subr.bf16.mxu0 0
        %799 = vmatpush1.bf16.msra.mxu0 0
        %800 = vmatprep.subr.bf16.mxu0 0
        %801 = vmatpush1.bf16.msra.mxu0 0
        %802 = vmatprep.subr.bf16.mxu0 0
        %803 = vmatpush1.bf16.msra.mxu0 0
        %804 = vmatprep.subr.bf16.mxu0 0
        %805 = vmatpush1.bf16.msra.mxu0 0
        %806 = vmatprep.subr.bf16.mxu0 0
        %807 = vmatpush1.bf16.msra.mxu0 0
        %808 = vmatprep.subr.bf16.mxu0 0
        %809 = vmatpush1.bf16.msra.mxu0 0
        %810 = vmatprep.mubr.bf16.mxu0 0
        %811 = vmatmul.mubr.bf16.gmra.mrb[0].mxu0 %v706
        %v812 = vpop.f32.mrb[0].mxu0
        %v813 = vadd.f32 0.0, %v812
        %v814 = vpop.f32.mrb[0].mxu0
        %v815 = vpop.f32.mrb[0].mxu0
        %v816 = vadd.f32 0.0, %v815
        %v817 = vpop.f32.mrb[0].mxu0
        %818 = vmatprep.mubr.bf16.mxu0 0
        %819 = vmatmul.mubr.bf16.gmra.mrb[0].mxu0 %v707
        %v820 = vpop.f32.mrb[0].mxu0
        %v821 = vadd.f32 0.0, %v820
        %v822 = vpop.f32.mrb[0].mxu0
        %v823 = vpop.f32.mrb[0].mxu0
        %v824 = vadd.f32 0.0, %v823
        %v825 = vpop.f32.mrb[0].mxu0
        %826 = vmatprep.mubr.bf16.mxu0 0
        %827 = vmatmul.mubr.bf16.gmra.mrb[0].mxu0 %v708
        %v828 = vpop.f32.mrb[0].mxu0
        %v829 = vadd.f32 0.0, %v828
        %v830 = vpop.f32.mrb[0].mxu0
        %v831 = vpop.f32.mrb[0].mxu0
        %v832 = vadd.f32 0.0, %v831
        %v833 = vpop.f32.mrb[0].mxu0
        %834 = vmatprep.mubr.bf16.mxu0 0
        %835 = vmatmul.mubr.bf16.gmra.mrb[0].mxu0 %v709
        %v836 = vpop.f32.mrb[0].mxu0
        %v837 = vadd.f32 0.0, %v836
        %v838 = vpop.f32.mrb[0].mxu0
        %v839 = vpop.f32.mrb[0].mxu0
        %v840 = vadd.f32 0.0, %v839
        %v841 = vpop.f32.mrb[0].mxu0
        %842 = vmatprep.mubr.bf16.mxu0 0
        %843 = vmatmul.mubr.bf16.gmra.mrb[0].mxu0 %v710
        %v844 = vpop.f32.mrb[0].mxu0
        %v845 = vadd.f32 0.0, %v844
        %v846 = vpop.f32.mrb[0].mxu0
        %v847 = vpop.f32.mrb[0].mxu0
        %v848 = vadd.f32 0.0, %v847
        %v849 = vpop.f32.mrb[0].mxu0
        %850 = vmatprep.mubr.bf16.mxu0 0
        %851 = vmatmul.mubr.bf16.gmra.mrb[0].mxu0 %v711
        %v852 = vpop.f32.mrb[0].mxu0
        %v853 = vadd.f32 0.0, %v852
        %v854 = vpop.f32.mrb[0].mxu0
        %v855 = vpop.f32.mrb[0].mxu0
        %v856 = vadd.f32 0.0, %v855
        %v857 = vpop.f32.mrb[0].mxu0
        %858 = vmatprep.mubr.bf16.mxu0 0
        %859 = vmatmul.mubr.bf16.gmra.mrb[0].mxu0 %v712
        %v860 = vpop.f32.mrb[0].mxu0
        %v861 = vadd.f32 0.0, %v860
        %v862 = vpop.f32.mrb[0].mxu0
        %v863 = vpop.f32.mrb[0].mxu0
        %v864 = vadd.f32 0.0, %v863
        %v865 = vpop.f32.mrb[0].mxu0
        %866 = vmatprep.mubr.bf16.mxu0 0
        %867 = vmatmul.mubr.bf16.gmra.mrb[0].mxu0 %v713
        %v868 = vpop.f32.mrb[0].mxu0
        %v869 = vadd.f32 0.0, %v868
        %v870 = vpop.f32.mrb[0].mxu0
        %v871 = vpop.f32.mrb[0].mxu0
        %v872 = vadd.f32 0.0, %v871
        %v873 = vpop.f32.mrb[0].mxu0
        %874 = vdwg.mxu0
        %v875 = vpack.c.bf16 %v816, %v813
        %v876 = vpack.c.bf16 %v824, %v821
        %v877 = vpack.c.bf16 %v832, %v829
        %v878 = vpack.c.bf16 %v840, %v837
        %v879 = vpack.c.bf16 %v848, %v845
        %v880 = vpack.c.bf16 %v856, %v853
        %v881 = vpack.c.bf16 %v864, %v861
        %v882 = vpack.c.bf16 %v872, %v869
        %v891 = vunpack.c.l.b16 %v875
        %v892 = vunpack.c.h.b16 %v875
        %v893 = vunpack.c.l.b16 %v876
        %v894 = vunpack.c.h.b16 %v876
        %v895 = vunpack.c.l.b16 %v877
        %v896 = vunpack.c.h.b16 %v877
        %v897 = vunpack.c.l.b16 %v878
        %v898 = vunpack.c.h.b16 %v878
        %v899 = vunpack.c.l.b16 %v879
        %v900 = vunpack.c.h.b16 %v879
        %v901 = vunpack.c.l.b16 %v880
        %v902 = vunpack.c.h.b16 %v880
        %v903 = vunpack.c.l.b16 %v881
        %v904 = vunpack.c.h.b16 %v881
        %v905 = vunpack.c.l.b16 %v882
        %v906 = vunpack.c.h.b16 %v882
        %v907 = vpack.c.b16 %v891, %v891
        %v908 = vpack.c.b16 %v892, %v892
        %v909 = vpack.c.b16 %v893, %v893
        %v910 = vpack.c.b16 %v894, %v894
        %v911 = vpack.c.b16 %v895, %v895
        %v912 = vpack.c.b16 %v896, %v896
        %v913 = vpack.c.b16 %v897, %v897
        %v914 = vpack.c.b16 %v898, %v898
        %v915 = vpack.c.b16 %v899, %v899
        %v916 = vpack.c.b16 %v900, %v900
        %v917 = vpack.c.b16 %v901, %v901
        %v918 = vpack.c.b16 %v902, %v902
        %v919 = vpack.c.b16 %v903, %v903
        %v920 = vpack.c.b16 %v904, %v904
        %v921 = vpack.c.b16 %v905, %v905
        %v922 = vpack.c.b16 %v906, %v906
        %939 = vst [vmem:[%s252] sm:$0xf] %v907
        %940 = vst [vmem:[%s252 + $0x4] sm:$0xf] %v908
        %941 = vst [vmem:[%s252 + $0x8] sm:$0xf] %v909
        %942 = vst [vmem:[%s252 + $0xc] sm:$0xf] %v910
        %943 = vst [vmem:[%s252 + $0x10] sm:$0xf] %v911
        %944 = vst [vmem:[%s252 + $0x14] sm:$0xf] %v912
        %945 = vst [vmem:[%s252 + $0x18] sm:$0xf] %v913
        %946 = vst [vmem:[%s252 + $0x1c] sm:$0xf] %v914
        %947 = vst [vmem:[%s252 + $0x20] sm:$0xf] %v915
        %948 = vst [vmem:[%s252 + $0x24] sm:$0xf] %v916
        %949 = vst [vmem:[%s252 + $0x28] sm:$0xf] %v917
        %950 = vst [vmem:[%s252 + $0x2c] sm:$0xf] %v918
        %951 = vst [vmem:[%s252 + $0x30] sm:$0xf] %v919
        %952 = vst [vmem:[%s252 + $0x34] sm:$0xf] %v920
        %953 = vst [vmem:[%s252 + $0x38] sm:$0xf] %v921
        %954 = vst [vmem:[%s252 + $0x3c] sm:$0xf] %v922
      $region48: #{gcn_forward.4} parent=35 // pred_fallthru
        _
      %s955 = smul.u32 16, %s19
      %p956 = scmp.lt.s32.totalorder %s955, 31
      %s957 = scalar_select %p956, %s955, 31
      %s958 = smul.addr %s957, 4
      %s959 = scalar_lea.vmem %s4, %s958
      // Predicated region
      $region49: #{gcn_forward.4} parent=35 // pred_check
        %p960 = pneg %p141
      $region50: #{gcn_forward.4} parent=35 // pred_check_branch
        %962 = sbr.rel (%p960) target = $region52
      $region51: #{gcn_forward.4} parent=35 // pred_region
        %s963 = smul.u32 16, %s19
      $region52: #{gcn_forward.4} parent=35 // pred_fallthru
        _
    $region36: #{gcn_forward.4} parent=5 // pred_fallthru
      _
    %p964 = scmp.le.s32.totalorder 2, %s10
    // Predicated region
    $region53: #{gcn_forward.4} parent=5 // pred_check
      %p965 = pneg %p964
    $region54: #{gcn_forward.4} parent=5 // pred_check_branch
      %967 = sbr.rel (%p965) target = $region56
    $region55: #{gcn_forward.4} parent=5 // pred_region
      %s968 = ssub.s32 %s10, 2
      // Predicated region
      $region57: #{gcn_forward.4} parent=55 // pred_check
        %p969 = pneg %p147
      $region58: #{gcn_forward.4} parent=55 // pred_check_branch
        %971 = sbr.rel (%p969) target = $region60
      $region59: #{gcn_forward.4} parent=55 // pred_region
        %s972 = smul.u32 16, %s21
        %p973 = scmp.lt.s32.totalorder %s972, 31
        %s974 = scalar_select %p973, %s972, 31
        %s975 = smul.addr %s974, 4
        %s976 = scalar_lea.vmem %s4, %s975
      $region60: #{gcn_forward.4} parent=55 // pred_fallthru
        _
    $region56: #{gcn_forward.4} parent=5 // pred_fallthru
      _
  $region6: #{gcn_forward.4} parent=0 // loop_footer
    %s14 = sadd.s32 1, %s10
  $region7: #{gcn_forward.4} parent=0 // loop_footer_branch
    %9 = sbr.rel target = $region3
  $region8: #{gcn_forward.4} parent=0 // loop_exit
    _

</llo_original>
